<compile_context>
chip_gen: v7x
topology: tpu7x:2x2x1
jax: 0.10.0
libtpu: 0.0.40
codegen_flags: <defaults>
</compile_context>

<pallas_src>
import functools

import jax
import jax.numpy as jnp
from jax.experimental import pallas as pl
from jax.experimental.pallas import tpu as pltpu


def _conv3x3_bn_relu_kernel(xm_ref, xh_ref, w_ref, scale_ref, bias_ref, o_ref,
                            *, fold_all_taps):
    # xm_ref:    (1, TH, Wp, Cin)  bf16   main TH padded input rows of this tile
    # xh_ref:    (1, 2,  Wp, Cin)  bf16   2-row halo directly below the main rows
    # w_ref:     fold_all_taps: (9*Cin, COUT_T)    bf16  [(kh*3+kw)*Cin + c, o]
    #            else:          (9, Cin, COUT_T)   bf16  [kh*3+kw, c, o]
    # scale_ref: (1, COUT_T) f32   folded BN scale = gamma / sqrt(var+eps)
    # bias_ref:  (1, COUT_T) f32   folded BN bias  = beta - mean * scale
    # o_ref:     (1, TH, Wo, COUT_T) bf16
    TH = o_ref.shape[1]
    Wo = o_ref.shape[2]
    Cout_t = o_ref.shape[3]
    Cin = xm_ref.shape[3]

    # Padded (TH+2, Wp, Cin) row block for this output row tile.
    xb = jnp.concatenate([xm_ref[0, :, :, :], xh_ref[0, :, :, :]], axis=0)

    if fold_all_taps:
        # Small Cin (stem): fold kh AND kw into one deep contraction -> 1 matmul.
        taps = [xb[kh:kh + TH, kw:kw + Wo, :]
                for kh in range(3) for kw in range(3)]
        patch = jnp.concatenate(taps, axis=-1).reshape(TH * Wo, 9 * Cin)
        acc = jnp.dot(patch, w_ref[...], preferred_element_type=jnp.float32)
    else:
        # Large Cin: K=Cin is already MXU-deep; per-tap matmuls, no im2row copy.
        acc = None
        for kh in range(3):
            for kw in range(3):
                patch = xb[kh:kh + TH, kw:kw + Wo, :].reshape(TH * Wo, Cin)
                part = jnp.dot(patch, w_ref[kh * 3 + kw],
                               preferred_element_type=jnp.float32)
                acc = part if acc is None else acc + part

    # Folded BatchNorm (eval) + ReLU; lane-dense COUT_T-wide bf16 store.
    y = jnp.maximum(acc * scale_ref[...] + bias_ref[...], 0.0)
    o_ref[0, ...] = y.astype(o_ref.dtype).reshape(TH, Wo, Cout_t)


def conv3x3_bn_relu(x_nchw, weight, gamma, beta, running_mean, running_var,
                    eps=1e-5, block_h=None, block_cout=None):
    """x_nchw: (N, Cin, H, W) f32, weight: (Cout, Cin, 3, 3) f32 (OIHW)."""
    N, Cin, H, W = x_nchw.shape
    Cout = weight.shape[0]

    # ---- tile sizes --------------------------------------------------------
    # Cout tile: 256 fills the v6e/v7x MXU when it divides Cout, else 128
    # (v5e MXU is 128-wide anyway and this avoids padding waste).
    if block_cout is None:
        COUT_T = 256 if (Cout >= 256 and Cout % 256 == 0) else 128
    else:
        COUT_T = int(block_cout)
    Cout_p = -(-Cout // COUT_T) * COUT_T
    n_cout = Cout_p // COUT_T

    # Output width padded to a multiple of 16 so in-kernel (TH,W,C)<->(TH*W,C)
    # reshapes are views (bf16 sublane tile = 16); extra columns are cropped.
    W_al = -(-W // 16) * 16

    # Row tile: TH*W_al >= 256 fills the MXU M dim; even for the halo trick.
    if block_h is None:
        TH = max(8, -(-256 // W_al))
    else:
        TH = int(block_h)
    TH += TH % 2
    TH = min(TH, max(2, H + (H % 2)))          # don't exceed (even-rounded) H
    assert TH % 2 == 0, "row tile must be even for the 2-row halo BlockSpec"
    n_h = -(-H // TH)
    H_t = n_h * TH

    # ---- input: NCHW -> NHWC, bf16, zero pad (conv pad + tile padding) -----
    x_nhwc = jnp.transpose(x_nchw, (0, 2, 3, 1)).astype(jnp.bfloat16)
    x_pad = jnp.pad(
        x_nhwc, ((0, 0), (1, H_t - H + 1), (1, W_al - W + 1), (0, 0)))
    Wp = W_al + 2

    # ---- weights: OIHW -> tap-major packed layout, bf16, Cout padded -------
    fold_all_taps = Cin < 128
    w_r = jnp.transpose(weight, (2, 3, 1, 0))                # (kh, kw, Cin, Cout)
    w_r = jnp.pad(w_r, ((0, 0), (0, 0), (0, 0), (0, Cout_p - Cout)))
    if fold_all_taps:
        w_packed = w_r.reshape(9 * Cin, Cout_p).astype(jnp.bfloat16)
        w_spec = pl.BlockSpec((9 * Cin, COUT_T), lambda c, n, h: (0, c))
    else:
        w_packed = w_r.reshape(9, Cin, Cout_p).astype(jnp.bfloat16)
        w_spec = pl.BlockSpec((9, Cin, COUT_T), lambda c, n, h: (0, 0, c))

    # ---- fold BatchNorm (inference) into per-channel scale & bias ----------
    scale = (gamma / jnp.sqrt(running_var + eps)).astype(jnp.float32)
    bias = (beta - running_mean * scale).astype(jnp.float32)
    scale_p = jnp.pad(scale, (0, Cout_p - Cout)).reshape(1, Cout_p)
    bias_p = jnp.pad(bias, (0, Cout_p - Cout)).reshape(1, Cout_p)

    kernel = functools.partial(_conv3x3_bn_relu_kernel,
                               fold_all_taps=fold_all_taps)

    out = pl.pallas_call(
        kernel,
        out_shape=jax.ShapeDtypeStruct((N, H_t, W_al, Cout_p), jnp.bfloat16),
        # Cout axis OUTERMOST: weight/scale/bias block indices only change
        # n_cout times -> they stay VMEM-resident across the whole (N, n_h)
        # sweep instead of being re-DMA'd every grid step.
        grid=(n_cout, N, n_h),
        in_specs=[
            # Main TH padded rows of this row tile.
            pl.BlockSpec((1, TH, Wp, Cin), lambda c, n, h: (n, h, 0, 0)),
            # 2-row halo just below them (element offset (h+1)*TH -> block idx;
            # valid only because TH is even, see assert above).
            pl.BlockSpec((1, 2, Wp, Cin),
                         lambda c, n, h: (n, (h + 1) * (TH // 2), 0, 0)),
            w_spec,
            pl.BlockSpec((1, COUT_T), lambda c, n, h: (0, c)),
            pl.BlockSpec((1, COUT_T), lambda c, n, h: (0, c)),
        ],
        out_specs=pl.BlockSpec((1, TH, W_al, COUT_T),
                               lambda c, n, h: (n, h, 0, c)),
        compiler_params=pltpu.CompilerParams(
            dimension_semantics=("parallel", "parallel", "parallel"),
            vmem_limit_bytes=48 * 1024 * 1024),   # headroom under v7x's 64 MiB
    )(x_pad, x_pad, w_packed, scale_p, bias_p)

    # Crop padded rows/cols/channels; NHWC -> NCHW, back to the caller's dtype.
    out = out[:, :H, :W, :Cout]
    return jnp.transpose(out, (0, 3, 1, 2)).astype(x_nchw.dtype)


def _reference(x_nchw, weight, gamma, beta, running_mean, running_var, eps=1e-5):
    y = jax.lax.conv_general_dilated(
        x_nchw, weight, window_strides=(1, 1), padding=((1, 1), (1, 1)),
        dimension_numbers=("NCHW", "OIHW", "NCHW"))
    s = gamma / jnp.sqrt(running_var + eps)
    b = beta - running_mean * s
    y = y * s[None, :, None, None] + b[None, :, None, None]
    return jnp.maximum(y, 0.0)


if __name__ == "__main__":
    key = jax.random.PRNGKey(0)
    k_x, k_w, k_g, k_b, k_m, k_v = jax.random.split(key, 6)

    N, Cin, Cout, H, W = 2, 4, 8, 16, 16

    x = jax.random.normal(k_x, (N, Cin, H, W), dtype=jnp.float32)
    weight = jax.random.normal(k_w, (Cout, Cin, 3, 3), dtype=jnp.float32) * 0.1
    gamma = jax.random.normal(k_g, (Cout,), dtype=jnp.float32) * 0.1 + 1.0
    beta = jax.random.normal(k_b, (Cout,), dtype=jnp.float32) * 0.1
    running_mean = jax.random.normal(k_m, (Cout,), dtype=jnp.float32) * 0.1
    running_var = jnp.abs(jax.random.normal(k_v, (Cout,), dtype=jnp.float32)) + 1.0

    out = conv3x3_bn_relu(x, weight, gamma, beta, running_mean, running_var)
    out = jax.block_until_ready(out)

    ref = _reference(x, weight, gamma, beta, running_mean, running_var)
    assert out.shape == (N, Cout, H, W)
    # bf16 MXU inputs + bf16 kernel output (f32 accumulate) vs f32 reference.
    assert jnp.allclose(out, ref, atol=5e-2, rtol=5e-2)

    print("KERNEL_OK")
</pallas_src>

<mosaic_0001>
module attributes {stable_mosaic.version = 11 : i64} {
  func.func @_conv3x3_bn_relu_kernel(%arg0: i32, %arg1: i32, %arg2: i32, %arg3: memref<1x16x18x4xbf16, #tpu.memory_space<vmem>>, %arg4: memref<1x2x18x4xbf16, #tpu.memory_space<vmem>>, %arg5: memref<36x128xbf16, #tpu.memory_space<vmem>>, %arg6: memref<1x128xf32, #tpu.memory_space<vmem>>, %arg7: memref<1x128xf32, #tpu.memory_space<vmem>>, %arg8: memref<1x16x16x128xbf16, #tpu.memory_space<vmem>>) attributes {dimension_semantics = [#tpu.dimension_semantics<parallel>, #tpu.dimension_semantics<parallel>, #tpu.dimension_semantics<parallel>], iteration_bounds = array<i64: 1, 2, 1>, scalar_prefetch = 0 : i64, scratch_operands = 0 : i64, tpu.core_type = #tpu.core_type<tc>, window_params = [{transform_indices = @transform_0, window_bounds = array<i64: 1, 16, 18, 4>}, {transform_indices = @transform_1, window_bounds = array<i64: 1, 2, 18, 4>}, {transform_indices = @transform_2, window_bounds = array<i64: 36, 128>}, {transform_indices = @transform_3, window_bounds = array<i64: 1, 128>}, {transform_indices = @transform_4, window_bounds = array<i64: 1, 128>}, {transform_indices = @transform_5, window_bounds = array<i64: 1, 16, 16, 128>}]} {
    %c0 = arith.constant 0 : index
    %c0_0 = arith.constant 0 : index
    %c0_1 = arith.constant 0 : index
    %c0_2 = arith.constant 0 : index
    %0 = vector.load %arg3[%c0, %c0_0, %c0_1, %c0_2] : memref<1x16x18x4xbf16, #tpu.memory_space<vmem>>, vector<1x16x18x4xbf16>
    %1 = vector.shape_cast %0 : vector<1x16x18x4xbf16> to vector<16x18x4xbf16>
    %c0_3 = arith.constant 0 : index
    %c0_4 = arith.constant 0 : index
    %c0_5 = arith.constant 0 : index
    %c0_6 = arith.constant 0 : index
    %2 = vector.load %arg4[%c0_3, %c0_4, %c0_5, %c0_6] : memref<1x2x18x4xbf16, #tpu.memory_space<vmem>>, vector<1x2x18x4xbf16>
    %3 = vector.shape_cast %2 : vector<1x2x18x4xbf16> to vector<2x18x4xbf16>
    %4 = tpu.concatenate %1, %3 in 0 : vector<16x18x4xbf16>, vector<2x18x4xbf16> -> vector<18x18x4xbf16>
    %5 = vector.extract_strided_slice %4 {offsets = [0, 0, 0], sizes = [16, 16, 4], strides = [1, 1, 1]} : vector<18x18x4xbf16> to vector<16x16x4xbf16>
    %6 = vector.extract_strided_slice %4 {offsets = [0, 1, 0], sizes = [16, 16, 4], strides = [1, 1, 1]} : vector<18x18x4xbf16> to vector<16x16x4xbf16>
    %7 = vector.extract_strided_slice %4 {offsets = [0, 2, 0], sizes = [16, 16, 4], strides = [1, 1, 1]} : vector<18x18x4xbf16> to vector<16x16x4xbf16>
    %8 = vector.extract_strided_slice %4 {offsets = [1, 0, 0], sizes = [16, 16, 4], strides = [1, 1, 1]} : vector<18x18x4xbf16> to vector<16x16x4xbf16>
    %9 = vector.extract_strided_slice %4 {offsets = [1, 1, 0], sizes = [16, 16, 4], strides = [1, 1, 1]} : vector<18x18x4xbf16> to vector<16x16x4xbf16>
    %10 = vector.extract_strided_slice %4 {offsets = [1, 2, 0], sizes = [16, 16, 4], strides = [1, 1, 1]} : vector<18x18x4xbf16> to vector<16x16x4xbf16>
    %11 = vector.extract_strided_slice %4 {offsets = [2, 0, 0], sizes = [16, 16, 4], strides = [1, 1, 1]} : vector<18x18x4xbf16> to vector<16x16x4xbf16>
    %12 = vector.extract_strided_slice %4 {offsets = [2, 1, 0], sizes = [16, 16, 4], strides = [1, 1, 1]} : vector<18x18x4xbf16> to vector<16x16x4xbf16>
    %13 = vector.extract_strided_slice %4 {offsets = [2, 2, 0], sizes = [16, 16, 4], strides = [1, 1, 1]} : vector<18x18x4xbf16> to vector<16x16x4xbf16>
    %14 = tpu.concatenate %5, %6, %7, %8, %9, %10, %11, %12, %13 in 2 : vector<16x16x4xbf16>, vector<16x16x4xbf16>, vector<16x16x4xbf16>, vector<16x16x4xbf16>, vector<16x16x4xbf16>, vector<16x16x4xbf16>, vector<16x16x4xbf16>, vector<16x16x4xbf16>, vector<16x16x4xbf16> -> vector<16x16x36xbf16>
    %15 = vector.shape_cast %14 : vector<16x16x36xbf16> to vector<256x36xbf16>
    %c0_7 = arith.constant 0 : index
    %c0_8 = arith.constant 0 : index
    %16 = vector.load %arg5[%c0_7, %c0_8] : memref<36x128xbf16, #tpu.memory_space<vmem>>, vector<36x128xbf16>
    %cst = arith.constant dense<0.000000e+00> : vector<256x128xf32>
    %17 = tpu.matmul %15, %16, %cst {dimension_numbers = #tpu.dot_dimension_numbers<[1], [0], [0], [1], [0, 0, 1, 1], [], []>} : vector<256x36xbf16>, vector<36x128xbf16>, vector<256x128xf32> -> vector<256x128xf32>
    %c0_9 = arith.constant 0 : index
    %c0_10 = arith.constant 0 : index
    %18 = vector.load %arg6[%c0_9, %c0_10] : memref<1x128xf32, #tpu.memory_space<vmem>>, vector<1x128xf32>
    %19 = vector.broadcast %18 : vector<1x128xf32> to vector<256x128xf32>
    %20 = arith.mulf %17, %19 : vector<256x128xf32>
    %c0_11 = arith.constant 0 : index
    %c0_12 = arith.constant 0 : index
    %21 = vector.load %arg7[%c0_11, %c0_12] : memref<1x128xf32, #tpu.memory_space<vmem>>, vector<1x128xf32>
    %22 = vector.broadcast %21 : vector<1x128xf32> to vector<256x128xf32>
    %23 = arith.addf %20, %22 : vector<256x128xf32>
    %cst_13 = arith.constant 0.000000e+00 : f32
    %24 = vector.broadcast %cst_13 : f32 to vector<256x128xf32>
    %25 = arith.maximumf %23, %24 : vector<256x128xf32>
    %26 = arith.truncf %25 : vector<256x128xf32> to vector<256x128xbf16>
    %27 = vector.shape_cast %26 : vector<256x128xbf16> to vector<16x16x128xbf16>
    %c0_14 = arith.constant 0 : index
    %c0_15 = arith.constant 0 : index
    %c0_16 = arith.constant 0 : index
    %c0_17 = arith.constant 0 : index
    %28 = vector.load %arg8[%c0_14, %c0_15, %c0_16, %c0_17] : memref<1x16x16x128xbf16, #tpu.memory_space<vmem>>, vector<1x16x16x128xbf16>
    %29 = vector.shape_cast %28 : vector<1x16x16x128xbf16> to vector<16x16x128xbf16>
    %30 = vector.shape_cast %27 : vector<16x16x128xbf16> to vector<1x16x16x128xbf16>
    tpu.vector_store %arg8[%c0_14, %c0_15, %c0_16, %c0_17], %30 {strides = array<i32>} : memref<1x16x16x128xbf16, #tpu.memory_space<vmem>>, vector<1x16x16x128xbf16>,
    return
  }
  func.func @transform_0(%arg0: i32, %arg1: i32, %arg2: i32) -> (i32, i32, i32, i32) {
    %c0_i32 = arith.constant 0 : i32
    %c0_i32_0 = arith.constant 0 : i32
    %c0_i32_1 = arith.constant 0 : i32
    return %arg1, %arg2, %c0_i32, %c0_i32_0 : i32, i32, i32, i32
  }
  func.func @transform_1(%arg0: i32, %arg1: i32, %arg2: i32) -> (i32, i32, i32, i32) {
    %c1_i32 = arith.constant 1 : i32
    %0 = arith.addi %arg2, %c1_i32 : i32
    %c8_i32 = arith.constant 8 : i32
    %1 = arith.muli %0, %c8_i32 : i32
    %c0_i32 = arith.constant 0 : i32
    %c0_i32_0 = arith.constant 0 : i32
    %c0_i32_1 = arith.constant 0 : i32
    return %arg1, %1, %c0_i32, %c0_i32_0 : i32, i32, i32, i32
  }
  func.func @transform_2(%arg0: i32, %arg1: i32, %arg2: i32) -> (i32, i32) {
    %c0_i32 = arith.constant 0 : i32
    %c0_i32_0 = arith.constant 0 : i32
    return %c0_i32, %arg0 : i32, i32
  }
  func.func @transform_3(%arg0: i32, %arg1: i32, %arg2: i32) -> (i32, i32) {
    %c0_i32 = arith.constant 0 : i32
    %c0_i32_0 = arith.constant 0 : i32
    return %c0_i32, %arg0 : i32, i32
  }
  func.func @transform_4(%arg0: i32, %arg1: i32, %arg2: i32) -> (i32, i32) {
    %c0_i32 = arith.constant 0 : i32
    %c0_i32_0 = arith.constant 0 : i32
    return %c0_i32, %arg0 : i32, i32
  }
  func.func @transform_5(%arg0: i32, %arg1: i32, %arg2: i32) -> (i32, i32, i32, i32) {
    %c0_i32 = arith.constant 0 : i32
    %c0_i32_0 = arith.constant 0 : i32
    return %arg1, %arg2, %c0_i32, %arg0 : i32, i32, i32, i32
  }
}

</mosaic_0001>

<llo_original>
// kernel: tpu_custom_call.1
$region0: #{tpu_custom_call.1}
  #allocation0 [shape = 'u32[]', space=smem, size = 0x4, offset = 0x4, fixed_abs, tag = 'smem constant byte address 0x4 - core index']
  #allocation1 [shape = 'u32[144,128]{1,0:T(1,128)}', space=vmem, size = 0x12000, scoped, tag = 'internal scratch']
  %s0 = inlined_call_operand.vmem [shape: bf16[2,18,18,4], index: 0, kind: input, shape index: {}]
  %s1 = inlined_call_operand.vmem [shape: bf16[2,18,18,4], index: 1, kind: input, shape index: {}]
  %s2 = inlined_call_operand.vmem [shape: bf16[36,128], index: 2, kind: input, shape index: {}]
  %s3 = inlined_call_operand.vmem [shape: f32[1,128], index: 3, kind: input, shape index: {}]
  %s4 = inlined_call_operand.vmem [shape: f32[1,128], index: 4, kind: input, shape index: {}]
  %s5 = inlined_call_operand.hbm [shape: bf16[2,16,16,128], index: 5, kind: output, shape index: {}]
  %s6 = sld [smem:[#allocation0]]
  $region53: #{tpu_custom_call.1} parent=0
    _
  %s8 = ssub.s32 1, %s6
  %s9 = scalar_select 0, %s8, %s6
  $region1: #{tpu_custom_call.1} parent=0
    #allocation2 [shape = 'u8[131072]{0}', space=vmem, size = 0x20000, scoped, tag = 'output window, operand 0']
    #allocation3 [shape = 's32[2]{0}', space=sflag, size = 0x8, scoped, tag = 'scoped memory for tpu_custom_call.1']
    %10 = vsyncpa [#allocation3], 0
    %s11 = scalar_lea.sflag [#allocation3], 1
    %12 = vsyncpa %s11, 0
    loop: start=0, step=1, limit=4
    $region2: #{tpu_custom_call.1} parent=1 // loop_pre_header
      _
    $region3: #{tpu_custom_call.1} parent=1 // loop_header
      %s14 = sphi 0, %s18
      %p15 = scmp.ge.s32.totalorder %s14, 4
      %s21 = sphi 0, %s40
      %s22 = sphi 0, %s36
      %s23 = sphi 0, %s32
      %s24 = sphi 0, %s21
      %s25 = sphi 0, %s22
      %s26 = sphi 0, %s23
      %s27 = sphi 0, %s24
      %s28 = sphi 0, %s25
      %s29 = sphi 0, %s26
      %s45 = sphi 0, %s47
      %s48 = sphi 0, %s45
      %s49 = sphi 0, %s48
      %s65 = sphi 0, %s49
      %s77 = sphi 0, %s79
      %s80 = sphi 0, %s77
      %s81 = sphi 0, %s80
      %s97 = sphi 0, %s81
      %s103 = sphi 0, %s105
      %s106 = sphi 0, %s103
      %s107 = sphi 0, %s106
      %s123 = sphi 0, %s107
      %s129 = sphi 0, %s131
      %s132 = sphi 0, %s129
      %s133 = sphi 0, %s132
      %s149 = sphi 0, %s133
      %s155 = sphi 0, %s157
      %s158 = sphi 0, %s155
      %s159 = sphi 0, %s158
      %s175 = sphi 0, %s159
      %s185 = sphi 0, %s187
      %s188 = sphi 0, %s185
      %s189 = sphi 0, %s188
      %s205 = sphi 0, %s189
    $region4: #{tpu_custom_call.1} parent=1 // loop_header_branch
      %17 = sbr.rel (%p15) target = $region8
    $region5: #{tpu_custom_call.1} parent=1 // loop_body
      %s19 = ssub.s32 %s14, 1
      %s20 = ssub.s32 %s14, 2
      %s30 = sadd.s32 1, %s23
      %p31 = scmp.ge.s32.totalorder %s30, 1
      %s32 = scalar_select %p31, 0, %s30
      %s33 = sadd.s32 1, %s22
      %s34 = scalar_select %p31, %s33, %s22
      %p35 = scmp.ge.s32.totalorder %s34, 2
      %s36 = scalar_select %p35, 0, %s34
      %s37 = sadd.s32 1, %s21
      %s38 = scalar_select %p35, %s37, %s21
      %p39 = scmp.ge.s32.totalorder %s38, 1
      %s40 = scalar_select %p39, 0, %s38
      %s41 = ssub.s32 %s22, %s36
      %s42 = ssub.s32 %s23, %s32
      %s43 = sor.u32 %s41, %s42
      %p44 = scmp.eq.s32.totalorder %s43, 0
      %s46 = sadd.s32 %s45, 1
      %s47 = scalar_select %p44, %s45, %s46
      %p50 = pneg %p44
      %p51 = scmp.eq.s32.totalorder %s14, 1
      %p52 = por %p50, %p51
      %p53 = scmp.ne.s32.totalorder %s45, %s48
      %p54 = scmp.eq.s32.totalorder %s14, 0
      %p55 = por %p53, %p54
      %p56 = scmp.ne.s32.totalorder %s45, %s48
      %p57 = scmp.eq.s32.totalorder %s19, 1
      %p58 = por %p56, %p57
      %p59 = scmp.ne.s32.totalorder %s48, %s49
      %p60 = scmp.eq.s32.totalorder %s19, 0
      %p61 = por %p59, %p60
      %p62 = scmp.ne.s32.totalorder %s48, %s49
      %p63 = scmp.eq.s32.totalorder %s20, 1
      %p64 = por %p62, %p63
      %p66 = scmp.ne.s32.totalorder %s49, %s65
      %p67 = scmp.eq.s32.totalorder %s20, 0
      %p68 = por %p66, %p67
      %s69 = sadd.s32 %s23, 1
      %s70 = smul.u32 %s69, 8
      %s71 = sadd.s32 %s32, 1
      %s72 = smul.u32 %s71, 8
      %s73 = ssub.s32 %s22, %s36
      %s74 = ssub.s32 %s70, %s72
      %s75 = sor.u32 %s73, %s74
      %p76 = scmp.eq.s32.totalorder %s75, 0
      %s78 = sadd.s32 %s77, 1
      %s79 = scalar_select %p76, %s77, %s78
      %p82 = pneg %p76
      %p83 = scmp.eq.s32.totalorder %s14, 1
      %p84 = por %p82, %p83
      %p85 = scmp.ne.s32.totalorder %s77, %s80
      %p86 = scmp.eq.s32.totalorder %s14, 0
      %p87 = por %p85, %p86
      %p88 = scmp.ne.s32.totalorder %s77, %s80
      %p89 = scmp.eq.s32.totalorder %s19, 1
      %p90 = por %p88, %p89
      %p91 = scmp.ne.s32.totalorder %s80, %s81
      %p92 = scmp.eq.s32.totalorder %s19, 0
      %p93 = por %p91, %p92
      %p94 = scmp.ne.s32.totalorder %s80, %s81
      %p95 = scmp.eq.s32.totalorder %s20, 1
      %p96 = por %p94, %p95
      %p98 = scmp.ne.s32.totalorder %s81, %s97
      %p99 = scmp.eq.s32.totalorder %s20, 0
      %p100 = por %p98, %p99
      %s101 = ssub.s32 %s21, %s40
      %p102 = scmp.eq.s32.totalorder %s101, 0
      %s104 = sadd.s32 %s103, 1
      %s105 = scalar_select %p102, %s103, %s104
      %p108 = pneg %p102
      %p109 = scmp.eq.s32.totalorder %s14, 1
      %p110 = por %p108, %p109
      %p111 = scmp.ne.s32.totalorder %s103, %s106
      %p112 = scmp.eq.s32.totalorder %s14, 0
      %p113 = por %p111, %p112
      %p114 = scmp.ne.s32.totalorder %s103, %s106
      %p115 = scmp.eq.s32.totalorder %s19, 1
      %p116 = por %p114, %p115
      %p117 = scmp.ne.s32.totalorder %s106, %s107
      %p118 = scmp.eq.s32.totalorder %s19, 0
      %p119 = por %p117, %p118
      %p120 = scmp.ne.s32.totalorder %s106, %s107
      %p121 = scmp.eq.s32.totalorder %s20, 1
      %p122 = por %p120, %p121
      %p124 = scmp.ne.s32.totalorder %s107, %s123
      %p125 = scmp.eq.s32.totalorder %s20, 0
      %p126 = por %p124, %p125
      %s127 = ssub.s32 %s21, %s40
      %p128 = scmp.eq.s32.totalorder %s127, 0
      %s130 = sadd.s32 %s129, 1
      %s131 = scalar_select %p128, %s129, %s130
      %p134 = pneg %p128
      %p135 = scmp.eq.s32.totalorder %s14, 1
      %p136 = por %p134, %p135
      %p137 = scmp.ne.s32.totalorder %s129, %s132
      %p138 = scmp.eq.s32.totalorder %s14, 0
      %p139 = por %p137, %p138
      %p140 = scmp.ne.s32.totalorder %s129, %s132
      %p141 = scmp.eq.s32.totalorder %s19, 1
      %p142 = por %p140, %p141
      %p143 = scmp.ne.s32.totalorder %s132, %s133
      %p144 = scmp.eq.s32.totalorder %s19, 0
      %p145 = por %p143, %p144
      %p146 = scmp.ne.s32.totalorder %s132, %s133
      %p147 = scmp.eq.s32.totalorder %s20, 1
      %p148 = por %p146, %p147
      %p150 = scmp.ne.s32.totalorder %s133, %s149
      %p151 = scmp.eq.s32.totalorder %s20, 0
      %p152 = por %p150, %p151
      %s153 = ssub.s32 %s21, %s40
      %p154 = scmp.eq.s32.totalorder %s153, 0
      %s156 = sadd.s32 %s155, 1
      %s157 = scalar_select %p154, %s155, %s156
      %p160 = pneg %p154
      %p161 = scmp.eq.s32.totalorder %s14, 1
      %p162 = por %p160, %p161
      %p163 = scmp.ne.s32.totalorder %s155, %s158
      %p164 = scmp.eq.s32.totalorder %s14, 0
      %p165 = por %p163, %p164
      %p166 = scmp.ne.s32.totalorder %s155, %s158
      %p167 = scmp.eq.s32.totalorder %s19, 1
      %p168 = por %p166, %p167
      %p169 = scmp.ne.s32.totalorder %s158, %s159
      %p170 = scmp.eq.s32.totalorder %s19, 0
      %p171 = por %p169, %p170
      %p172 = scmp.ne.s32.totalorder %s158, %s159
      %p173 = scmp.eq.s32.totalorder %s20, 1
      %p174 = por %p172, %p173
      %p176 = scmp.ne.s32.totalorder %s159, %s175
      %p177 = scmp.eq.s32.totalorder %s20, 0
      %p178 = por %p176, %p177
      %s179 = ssub.s32 %s22, %s36
      %s180 = ssub.s32 %s23, %s32
      %s181 = sor.u32 %s179, %s180
      %s182 = ssub.s32 %s21, %s40
      %s183 = sor.u32 %s181, %s182
      %p184 = scmp.eq.s32.totalorder %s183, 0
      %s186 = sadd.s32 %s185, 1
      %s187 = scalar_select %p184, %s185, %s186
      %p190 = pneg %p184
      %p191 = scmp.eq.s32.totalorder %s14, 1
      %p192 = por %p190, %p191
      %p193 = scmp.ne.s32.totalorder %s185, %s188
      %p194 = scmp.eq.s32.totalorder %s14, 0
      %p195 = por %p193, %p194
      %p196 = scmp.ne.s32.totalorder %s185, %s188
      %p197 = scmp.eq.s32.totalorder %s19, 1
      %p198 = por %p196, %p197
      %p199 = scmp.ne.s32.totalorder %s188, %s189
      %p200 = scmp.eq.s32.totalorder %s19, 0
      %p201 = por %p199, %p200
      %p202 = scmp.ne.s32.totalorder %s188, %s189
      %p203 = scmp.eq.s32.totalorder %s20, 1
      %p204 = por %p202, %p203
      %p206 = scmp.ne.s32.totalorder %s189, %s205
      %p207 = scmp.eq.s32.totalorder %s20, 0
      %p208 = por %p206, %p207
      %p209 = scmp.le.s32.totalorder 1, %s14
      %p210 = scmp.lt.s32.totalorder %s14, 3
      %p211 = pnand %p209, %p210
      %p212 = pneg %p211
      // Predicated region
      $region9: #{tpu_custom_call.1} parent=5 // pred_check
        _
      $region10: #{tpu_custom_call.1} parent=5 // pred_check_branch
        %214 = sbr.rel (%p211) target = $region12
      $region11: #{tpu_custom_call.1} parent=5 // pred_region
        %s215 = ssub.s32 %s14, 1
        // Predicated region
        $region13: #{tpu_custom_call.1} parent=11 // pred_check
          %p216 = pneg %p119
        $region14: #{tpu_custom_call.1} parent=11 // pred_check_branch
          %218 = sbr.rel (%p216) target = $region16
        $region15: #{tpu_custom_call.1} parent=11 // pred_region
          %p219 = scmp.lt.s32.totalorder %s24, 0
          %s220 = scalar_select %p219, %s24, 0
          %s221 = smul.addr %s220, 4
          %s222 = scalar_lea.vmem %s2, %s221
        $region16: #{tpu_custom_call.1} parent=11 // pred_fallthru
          _
        // Predicated region
        $region17: #{tpu_custom_call.1} parent=11 // pred_check
          %p223 = pneg %p145
        $region18: #{tpu_custom_call.1} parent=11 // pred_check_branch
          %225 = sbr.rel (%p223) target = $region20
        $region19: #{tpu_custom_call.1} parent=11 // pred_region
          %p226 = scmp.lt.s32.totalorder %s24, 0
          %s227 = scalar_select %p226, %s24, 0
          %s228 = scalar_lea.vmem %s3, %s227
        $region20: #{tpu_custom_call.1} parent=11 // pred_fallthru
          _
        // Predicated region
        $region21: #{tpu_custom_call.1} parent=11 // pred_check
          %p229 = pneg %p171
        $region22: #{tpu_custom_call.1} parent=11 // pred_check_branch
          %231 = sbr.rel (%p229) target = $region24
        $region23: #{tpu_custom_call.1} parent=11 // pred_region
          %p232 = scmp.lt.s32.totalorder %s24, 0
          %s233 = scalar_select %p232, %s24, 0
          %s234 = scalar_lea.vmem %s4, %s233
        $region24: #{tpu_custom_call.1} parent=11 // pred_fallthru
          _
      $region12: #{tpu_custom_call.1} parent=5 // pred_fallthru
        _
      %p235 = scmp.lt.s32.totalorder %s14, 2
      // Predicated region
      $region25: #{tpu_custom_call.1} parent=5 // pred_check
        %p236 = pneg %p235
      $region26: #{tpu_custom_call.1} parent=5 // pred_check_branch
        %238 = sbr.rel (%p236) target = $region28
      $region27: #{tpu_custom_call.1} parent=5 // pred_region
        // Predicated region
        $region29: #{tpu_custom_call.1} parent=27 // pred_check
          %p239 = pneg %p55
        $region30: #{tpu_custom_call.1} parent=27 // pred_check_branch
          %241 = sbr.rel (%p239) target = $region32
        $region31: #{tpu_custom_call.1} parent=27 // pred_region
          %s242 = smul.u32 16, %s23
          %s243 = ssub.s32 18, %s242
          %p244 = scmp.lt.s32.totalorder %s243, 16
          %s245 = scalar_select %p244, %s243, 16
          %s246 = smul.u32 64, %s245
          %s247 = smul.u32 %s246, 3
          %p248 = scmp.lt.s32.totalorder %s22, 1
          %s249 = scalar_select %p248, %s22, 1
          %p250 = scmp.lt.s32.totalorder %s242, 17
          %s251 = scalar_select %p250, %s242, 17
          %s252 = smul.addr %s251, 3
          %s253 = smul.addr %s249, 54
          %s254 = sadd.s32 %s252, %s253
          %s255 = smul.addr %s254, 4
          %s256 = scalar_lea.vmem %s0, %s255
          %s257 = smul.u32 16, %s23
          %s258 = ssub.s32 18, %s257
          %p259 = scmp.lt.s32.totalorder %s258, 16
          %s260 = scalar_select %p259, %s258, 16
          %s261 = smul.u32 64, %s260
          %s262 = smul.u32 %s261, 3
        $region32: #{tpu_custom_call.1} parent=27 // pred_fallthru
          _
        // Predicated region
        $region33: #{tpu_custom_call.1} parent=27 // pred_check
          %p263 = pneg %p87
        $region34: #{tpu_custom_call.1} parent=27 // pred_check_branch
          %265 = sbr.rel (%p263) target = $region36
        $region35: #{tpu_custom_call.1} parent=27 // pred_region
          %s266 = sadd.s32 %s23, 1
          %s267 = smul.u32 %s266, 8
          %s268 = smul.u32 2, %s267
          %p269 = scmp.lt.s32.totalorder %s22, 1
          %s270 = scalar_select %p269, %s22, 1
          %p271 = scmp.lt.s32.totalorder %s268, 17
          %s272 = scalar_select %p271, %s268, 17
          %s273 = smul.addr %s272, 3
          %s274 = smul.addr %s270, 54
          %s275 = sadd.s32 %s273, %s274
          %s276 = smul.addr %s275, 4
          %s277 = scalar_lea.vmem %s1, %s276
          %s278 = sadd.s32 %s23, 1
          %s279 = smul.u32 %s278, 8
          %s280 = smul.u32 2, %s279
        $region36: #{tpu_custom_call.1} parent=27 // pred_fallthru
          _
      $region28: #{tpu_custom_call.1} parent=5 // pred_fallthru
        _
      %p281 = scmp.le.s32.totalorder 1, %s14
      %p282 = scmp.lt.s32.totalorder %s14, 3
      %p283 = pnand %p281, %p282
      %p284 = pneg %p283
      // Predicated region
      $region37: #{tpu_custom_call.1} parent=5 // pred_check
        _
      $region38: #{tpu_custom_call.1} parent=5 // pred_check_branch
        %286 = sbr.rel (%p283) target = $region40
      $region39: #{tpu_custom_call.1} parent=5 // pred_region
        %s287 = ssub.s32 %s14, 1
        %s288 = smul.u32 16, %s26
        %s289 = ssub.s32 18, %s288
        %p290 = scmp.lt.s32.totalorder %s289, 16
        %s291 = scalar_select %p290, %s289, 16
        %s292 = smul.u32 64, %s291
        %s293 = smul.u32 %s292, 3
        %p294 = scmp.lt.s32.totalorder %s25, 1
        %s295 = scalar_select %p294, %s25, 1
        %p296 = scmp.lt.s32.totalorder %s288, 17
        %s297 = scalar_select %p296, %s288, 17
        %s298 = smul.addr %s297, 3
        %s299 = smul.addr %s295, 54
        %s300 = sadd.s32 %s298, %s299
        %s301 = smul.addr %s300, 4
        %s302 = scalar_lea.vmem %s0, %s301
        %p303 = pneg %p61
        %p304 = pneg %p58
        %s305 = sadd.s32 %s26, 1
        %s306 = smul.u32 %s305, 8
        %s307 = smul.u32 2, %s306
        %p308 = scmp.lt.s32.totalorder %s25, 1
        %s309 = scalar_select %p308, %s25, 1
        %p310 = scmp.lt.s32.totalorder %s307, 17
        %s311 = scalar_select %p310, %s307, 17
        %s312 = smul.addr %s311, 3
        %s313 = smul.addr %s309, 54
        %s314 = sadd.s32 %s312, %s313
        %s315 = smul.addr %s314, 4
        %s316 = scalar_lea.vmem %s1, %s315
        %p317 = pneg %p93
        %p318 = pneg %p90
        %p319 = scmp.lt.s32.totalorder %s24, 0
        %s320 = scalar_select %p319, %s24, 0
        %s321 = smul.addr %s320, 4
        %s322 = scalar_lea.vmem %s2, %s321
        %p323 = pneg %p119
        %p324 = pneg %p116
        %p325 = scmp.lt.s32.totalorder %s24, 0
        %s326 = scalar_select %p325, %s24, 0
        %s327 = scalar_lea.vmem %s3, %s326
        %p328 = pneg %p145
        %p329 = pneg %p142
        %p330 = scmp.lt.s32.totalorder %s24, 0
        %s331 = scalar_select %p330, %s24, 0
        %s332 = scalar_lea.vmem %s4, %s331
        %p333 = pneg %p171
        %p334 = pneg %p168
        %p335 = pneg %p201
        %p336 = pneg %p198
        %s337 = sand.u32 %s188, 1
        %s338 = scalar_lea.sflag [#allocation3], %s337
        %s339 = sand.u32 %s188, 1
        %s340 = smul.addr %s339, 128
        %s341 = scalar_lea.vmem [#allocation2], %s340
        %s342 = smul.u32 16, %s26
        %s343 = ssub.s32 18, %s342
        %p344 = scmp.lt.s32.totalorder %s343, 16
        %s345 = scalar_select %p344, %s343, 16
        %s346 = smul.u32 64, %s345
        %s347 = smul.u32 %s346, 3
        %p348 = scmp.lt.s32.totalorder %s25, 1
        %s349 = scalar_select %p348, %s25, 1
        %p350 = scmp.lt.s32.totalorder %s342, 17
        %s351 = scalar_select %p350, %s342, 17
        %s352 = smul.addr %s351, 3
        %s353 = smul.addr %s349, 54
        %s354 = sadd.s32 %s352, %s353
        %s355 = smul.addr %s354, 4
        %s356 = scalar_lea.vmem %s0, %s355
        %s357 = smul.u32 16, %s26
        %s358 = ssub.s32 18, %s357
        %p359 = scmp.lt.s32.totalorder %s358, 16
        %s360 = scalar_select %p359, %s358, 16
        %s361 = smul.u32 64, %s360
        %s362 = smul.u32 %s361, 3
        %s363 = sadd.s32 %s26, 1
        %s364 = smul.u32 %s363, 8
        %s365 = smul.u32 2, %s364
        %p366 = scmp.lt.s32.totalorder %s25, 1
        %s367 = scalar_select %p366, %s25, 1
        %p368 = scmp.lt.s32.totalorder %s365, 17
        %s369 = scalar_select %p368, %s365, 17
        %s370 = smul.addr %s369, 3
        %s371 = smul.addr %s367, 54
        %s372 = sadd.s32 %s370, %s371
        %s373 = smul.addr %s372, 4
        %s374 = scalar_lea.vmem %s1, %s373
        %s375 = sadd.s32 %s26, 1
        %s376 = smul.u32 %s375, 8
        %s377 = smul.u32 2, %s376
        %p378 = scmp.lt.s32.totalorder %s24, 0
        %s379 = scalar_select %p378, %s24, 0
        %s380 = smul.addr %s379, 4
        %s381 = scalar_lea.vmem %s2, %s380
        %p382 = scmp.lt.s32.totalorder %s24, 0
        %s383 = scalar_select %p382, %s24, 0
        %s384 = scalar_lea.vmem %s3, %s383
        %p385 = scmp.lt.s32.totalorder %s24, 0
        %s386 = scalar_select %p385, %s24, 0
        %s387 = scalar_lea.vmem %s4, %s386
        %s388 = smul.u32 16, %s26
        %v390 = vld [vmem:[%s356] sm:$0xf]
        %v391 = vld [vmem:[%s356 + $0x4] sm:$0xf]
        %v392 = vld [vmem:[%s356 + $0x8] sm:$0x1]
        %v393 = vld [vmem:[%s356 + $0xc] sm:$0xf]
        %v394 = vld [vmem:[%s356 + $0x10] sm:$0xf]
        %v395 = vld [vmem:[%s356 + $0x14] sm:$0x1]
        %v396 = vld [vmem:[%s356 + $0x18] sm:$0xf]
        %v397 = vld [vmem:[%s356 + $0x1c] sm:$0xf]
        %v398 = vld [vmem:[%s356 + $0x20] sm:$0x1]
        %v399 = vld [vmem:[%s356 + $0x24] sm:$0xf]
        %v400 = vld [vmem:[%s356 + $0x28] sm:$0xf]
        %v401 = vld [vmem:[%s356 + $0x2c] sm:$0x1]
        %v402 = vld [vmem:[%s356 + $0x30] sm:$0xf]
        %v403 = vld [vmem:[%s356 + $0x34] sm:$0xf]
        %v404 = vld [vmem:[%s356 + $0x38] sm:$0x1]
        %v405 = vld [vmem:[%s356 + $0x3c] sm:$0xf]
        %v406 = vld [vmem:[%s356 + $0x40] sm:$0xf]
        %v407 = vld [vmem:[%s356 + $0x44] sm:$0x1]
        %v408 = vld [vmem:[%s356 + $0x48] sm:$0xf]
        %v409 = vld [vmem:[%s356 + $0x4c] sm:$0xf]
        %v410 = vld [vmem:[%s356 + $0x50] sm:$0x1]
        %v411 = vld [vmem:[%s356 + $0x54] sm:$0xf]
        %v412 = vld [vmem:[%s356 + $0x58] sm:$0xf]
        %v413 = vld [vmem:[%s356 + $0x5c] sm:$0x1]
        %v414 = vld [vmem:[%s356 + $0x60] sm:$0xf]
        %v415 = vld [vmem:[%s356 + $0x64] sm:$0xf]
        %v416 = vld [vmem:[%s356 + $0x68] sm:$0x1]
        %v417 = vld [vmem:[%s356 + $0x6c] sm:$0xf]
        %v418 = vld [vmem:[%s356 + $0x70] sm:$0xf]
        %v419 = vld [vmem:[%s356 + $0x74] sm:$0x1]
        %v420 = vld [vmem:[%s356 + $0x78] sm:$0xf]
        %v421 = vld [vmem:[%s356 + $0x7c] sm:$0xf]
        %v422 = vld [vmem:[%s356 + $0x80] sm:$0x1]
        %v423 = vld [vmem:[%s356 + $0x84] sm:$0xf]
        %v424 = vld [vmem:[%s356 + $0x88] sm:$0xf]
        %v425 = vld [vmem:[%s356 + $0x8c] sm:$0x1]
        %v426 = vld [vmem:[%s356 + $0x90] sm:$0xf]
        %v427 = vld [vmem:[%s356 + $0x94] sm:$0xf]
        %v428 = vld [vmem:[%s356 + $0x98] sm:$0x1]
        %v429 = vld [vmem:[%s356 + $0x9c] sm:$0xf]
        %v430 = vld [vmem:[%s356 + $0xa0] sm:$0xf]
        %v431 = vld [vmem:[%s356 + $0xa4] sm:$0x1]
        %v432 = vld [vmem:[%s356 + $0xa8] sm:$0xf]
        %v433 = vld [vmem:[%s356 + $0xac] sm:$0xf]
        %v434 = vld [vmem:[%s356 + $0xb0] sm:$0x1]
        %v435 = vld [vmem:[%s356 + $0xb4] sm:$0xf]
        %v436 = vld [vmem:[%s356 + $0xb8] sm:$0xf]
        %v437 = vld [vmem:[%s356 + $0xbc] sm:$0x1]
        %v438 = vld [vmem:[%s374] sm:$0xf]
        %v439 = vld [vmem:[%s374 + $0x4] sm:$0xf]
        %v440 = vld [vmem:[%s374 + $0x8] sm:$0x1]
        %v441 = vld [vmem:[%s374 + $0xc] sm:$0xf]
        %v442 = vld [vmem:[%s374 + $0x10] sm:$0xf]
        %v443 = vld [vmem:[%s374 + $0x14] sm:$0x1]
        %v476 = vunpack.c.l.b16 %v390
        %v477 = vunpack.c.l.b16 %v391
        %v478 = vunpack.c.l.b16 %v393
        %v479 = vunpack.c.l.b16 %v394
        %v480 = vunpack.c.l.b16 %v396
        %v481 = vunpack.c.l.b16 %v397
        %v482 = vunpack.c.l.b16 %v399
        %v483 = vunpack.c.l.b16 %v400
        %v484 = vunpack.c.l.b16 %v402
        %v485 = vunpack.c.l.b16 %v403
        %v486 = vunpack.c.l.b16 %v405
        %v487 = vunpack.c.l.b16 %v406
        %v488 = vunpack.c.l.b16 %v408
        %v489 = vunpack.c.l.b16 %v409
        %v490 = vunpack.c.l.b16 %v411
        %v491 = vunpack.c.l.b16 %v412
        %v492 = vunpack.c.l.b16 %v414
        %v493 = vunpack.c.l.b16 %v415
        %v494 = vunpack.c.l.b16 %v417
        %v495 = vunpack.c.l.b16 %v418
        %v496 = vunpack.c.l.b16 %v420
        %v497 = vunpack.c.l.b16 %v421
        %v498 = vunpack.c.l.b16 %v423
        %v499 = vunpack.c.l.b16 %v424
        %v500 = vunpack.c.l.b16 %v426
        %v501 = vunpack.c.l.b16 %v427
        %v502 = vunpack.c.l.b16 %v429
        %v503 = vunpack.c.l.b16 %v430
        %v504 = vunpack.c.l.b16 %v432
        %v505 = vunpack.c.l.b16 %v433
        %v506 = vunpack.c.l.b16 %v435
        %v507 = vunpack.c.l.b16 %v436
        %v508 = vpack.c.b16 %v477, %v476
        %v509 = vpack.c.b16 %v479, %v478
        %v510 = vpack.c.b16 %v481, %v480
        %v511 = vpack.c.b16 %v483, %v482
        %v512 = vpack.c.b16 %v485, %v484
        %v513 = vpack.c.b16 %v487, %v486
        %v514 = vpack.c.b16 %v489, %v488
        %v515 = vpack.c.b16 %v491, %v490
        %v516 = vpack.c.b16 %v493, %v492
        %v517 = vpack.c.b16 %v495, %v494
        %v518 = vpack.c.b16 %v497, %v496
        %v519 = vpack.c.b16 %v499, %v498
        %v520 = vpack.c.b16 %v501, %v500
        %v521 = vpack.c.b16 %v503, %v502
        %v522 = vpack.c.b16 %v505, %v504
        %v523 = vpack.c.b16 %v507, %v506
        %v540 = vunpack.c.l.b16 %v392
        %v541 = vunpack.c.l.b16 %v395
        %v542 = vunpack.c.l.b16 %v398
        %v543 = vunpack.c.l.b16 %v401
        %v544 = vunpack.c.l.b16 %v404
        %v545 = vunpack.c.l.b16 %v407
        %v546 = vunpack.c.l.b16 %v410
        %v547 = vunpack.c.l.b16 %v413
        %v548 = vunpack.c.l.b16 %v416
        %v549 = vunpack.c.l.b16 %v419
        %v550 = vunpack.c.l.b16 %v422
        %v551 = vunpack.c.l.b16 %v425
        %v552 = vunpack.c.l.b16 %v428
        %v553 = vunpack.c.l.b16 %v431
        %v554 = vunpack.c.l.b16 %v434
        %v555 = vunpack.c.l.b16 %v437
        %v556 = vpack.c.b16 %v540, %v540
        %v557 = vpack.c.b16 %v541, %v541
        %v558 = vpack.c.b16 %v542, %v542
        %v559 = vpack.c.b16 %v543, %v543
        %v560 = vpack.c.b16 %v544, %v544
        %v561 = vpack.c.b16 %v545, %v545
        %v562 = vpack.c.b16 %v546, %v546
        %v563 = vpack.c.b16 %v547, %v547
        %v564 = vpack.c.b16 %v548, %v548
        %v565 = vpack.c.b16 %v549, %v549
        %v566 = vpack.c.b16 %v550, %v550
        %v567 = vpack.c.b16 %v551, %v551
        %v568 = vpack.c.b16 %v552, %v552
        %v569 = vpack.c.b16 %v553, %v553
        %v570 = vpack.c.b16 %v554, %v554
        %v571 = vpack.c.b16 %v555, %v555
        %vm572 = vsmask.f32 7424
        %v574 = vshrl.u32 %v508, 16
        %v576 = vshll.u32 %v508, 16
        %v578 = vrot.slane %v576, 1
        %v579 = vor.u32 %v574, %v578
        %v581 = vshll.u32 %v556, 16
        %v583 = vrot.slane %v581, 1
        %v584 = vsel %vm572, %v579, %v583
        %v586 = vshrl.u32 %v509, 16
        %v588 = vshll.u32 %v509, 16
        %v590 = vrot.slane %v588, 1
        %v591 = vor.u32 %v586, %v590
        %v593 = vshll.u32 %v557, 16
        %v595 = vrot.slane %v593, 1
        %v596 = vsel %vm572, %v591, %v595
        %v598 = vshrl.u32 %v510, 16
        %v600 = vshll.u32 %v510, 16
        %v602 = vrot.slane %v600, 1
        %v603 = vor.u32 %v598, %v602
        %v605 = vshll.u32 %v558, 16
        %v607 = vrot.slane %v605, 1
        %v608 = vsel %vm572, %v603, %v607
        %v610 = vshrl.u32 %v511, 16
        %v612 = vshll.u32 %v511, 16
        %v614 = vrot.slane %v612, 1
        %v615 = vor.u32 %v610, %v614
        %v617 = vshll.u32 %v559, 16
        %v619 = vrot.slane %v617, 1
        %v620 = vsel %vm572, %v615, %v619
        %v622 = vshrl.u32 %v512, 16
        %v624 = vshll.u32 %v512, 16
        %v626 = vrot.slane %v624, 1
        %v627 = vor.u32 %v622, %v626
        %v629 = vshll.u32 %v560, 16
        %v631 = vrot.slane %v629, 1
        %v632 = vsel %vm572, %v627, %v631
        %v634 = vshrl.u32 %v513, 16
        %v636 = vshll.u32 %v513, 16
        %v638 = vrot.slane %v636, 1
        %v639 = vor.u32 %v634, %v638
        %v641 = vshll.u32 %v561, 16
        %v643 = vrot.slane %v641, 1
        %v644 = vsel %vm572, %v639, %v643
        %v646 = vshrl.u32 %v514, 16
        %v648 = vshll.u32 %v514, 16
        %v650 = vrot.slane %v648, 1
        %v651 = vor.u32 %v646, %v650
        %v653 = vshll.u32 %v562, 16
        %v655 = vrot.slane %v653, 1
        %v656 = vsel %vm572, %v651, %v655
        %v658 = vshrl.u32 %v515, 16
        %v660 = vshll.u32 %v515, 16
        %v662 = vrot.slane %v660, 1
        %v663 = vor.u32 %v658, %v662
        %v665 = vshll.u32 %v563, 16
        %v667 = vrot.slane %v665, 1
        %v668 = vsel %vm572, %v663, %v667
        %v670 = vshrl.u32 %v516, 16
        %v672 = vshll.u32 %v516, 16
        %v674 = vrot.slane %v672, 1
        %v675 = vor.u32 %v670, %v674
        %v677 = vshll.u32 %v564, 16
        %v679 = vrot.slane %v677, 1
        %v680 = vsel %vm572, %v675, %v679
        %v682 = vshrl.u32 %v517, 16
        %v684 = vshll.u32 %v517, 16
        %v686 = vrot.slane %v684, 1
        %v687 = vor.u32 %v682, %v686
        %v689 = vshll.u32 %v565, 16
        %v691 = vrot.slane %v689, 1
        %v692 = vsel %vm572, %v687, %v691
        %v694 = vshrl.u32 %v518, 16
        %v696 = vshll.u32 %v518, 16
        %v698 = vrot.slane %v696, 1
        %v699 = vor.u32 %v694, %v698
        %v701 = vshll.u32 %v566, 16
        %v703 = vrot.slane %v701, 1
        %v704 = vsel %vm572, %v699, %v703
        %v706 = vshrl.u32 %v519, 16
        %v708 = vshll.u32 %v519, 16
        %v710 = vrot.slane %v708, 1
        %v711 = vor.u32 %v706, %v710
        %v713 = vshll.u32 %v567, 16
        %v715 = vrot.slane %v713, 1
        %v716 = vsel %vm572, %v711, %v715
        %v718 = vshrl.u32 %v520, 16
        %v720 = vshll.u32 %v520, 16
        %v722 = vrot.slane %v720, 1
        %v723 = vor.u32 %v718, %v722
        %v725 = vshll.u32 %v568, 16
        %v727 = vrot.slane %v725, 1
        %v728 = vsel %vm572, %v723, %v727
        %v730 = vshrl.u32 %v521, 16
        %v732 = vshll.u32 %v521, 16
        %v734 = vrot.slane %v732, 1
        %v735 = vor.u32 %v730, %v734
        %v737 = vshll.u32 %v569, 16
        %v739 = vrot.slane %v737, 1
        %v740 = vsel %vm572, %v735, %v739
        %v742 = vshrl.u32 %v522, 16
        %v744 = vshll.u32 %v522, 16
        %v746 = vrot.slane %v744, 1
        %v747 = vor.u32 %v742, %v746
        %v749 = vshll.u32 %v570, 16
        %v751 = vrot.slane %v749, 1
        %v752 = vsel %vm572, %v747, %v751
        %v754 = vshrl.u32 %v523, 16
        %v756 = vshll.u32 %v523, 16
        %v758 = vrot.slane %v756, 1
        %v759 = vor.u32 %v754, %v758
        %v761 = vshll.u32 %v571, 16
        %v763 = vrot.slane %v761, 1
        %v764 = vsel %vm572, %v759, %v763
        %765 = vrot.lane.b32.xlu0 %v584, 4
        %v766 = vpop.permute.xlu0 %765
        %767 = vrot.lane.b32.xlu0 %v596, 4
        %v768 = vpop.permute.xlu0 %767
        %769 = vrot.lane.b32.xlu0 %v608, 4
        %v770 = vpop.permute.xlu0 %769
        %771 = vrot.lane.b32.xlu0 %v620, 4
        %v772 = vpop.permute.xlu0 %771
        %773 = vrot.lane.b32.xlu0 %v632, 4
        %v774 = vpop.permute.xlu0 %773
        %775 = vrot.lane.b32.xlu0 %v644, 4
        %v776 = vpop.permute.xlu0 %775
        %777 = vrot.lane.b32.xlu0 %v656, 4
        %v778 = vpop.permute.xlu0 %777
        %779 = vrot.lane.b32.xlu0 %v668, 4
        %v780 = vpop.permute.xlu0 %779
        %781 = vrot.lane.b32.xlu0 %v680, 4
        %v782 = vpop.permute.xlu0 %781
        %783 = vrot.lane.b32.xlu0 %v692, 4
        %v784 = vpop.permute.xlu0 %783
        %785 = vrot.lane.b32.xlu0 %v704, 4
        %v786 = vpop.permute.xlu0 %785
        %787 = vrot.lane.b32.xlu0 %v716, 4
        %v788 = vpop.permute.xlu0 %787
        %789 = vrot.lane.b32.xlu0 %v728, 4
        %v790 = vpop.permute.xlu0 %789
        %791 = vrot.lane.b32.xlu0 %v740, 4
        %v792 = vpop.permute.xlu0 %791
        %793 = vrot.lane.b32.xlu0 %v752, 4
        %v794 = vpop.permute.xlu0 %793
        %795 = vrot.lane.b32.xlu0 %v764, 4
        %v796 = vpop.permute.xlu0 %795
        %vm797 = vcmask 1046528
        %v798 = vrot.slane %v508, 1
        %v799 = vrot.slane %v556, 1
        %v800 = vsel %vm797, %v798, %v799
        %v801 = vrot.slane %v509, 1
        %v802 = vrot.slane %v557, 1
        %v803 = vsel %vm797, %v801, %v802
        %v804 = vrot.slane %v510, 1
        %v805 = vrot.slane %v558, 1
        %v806 = vsel %vm797, %v804, %v805
        %v807 = vrot.slane %v511, 1
        %v808 = vrot.slane %v559, 1
        %v809 = vsel %vm797, %v807, %v808
        %v810 = vrot.slane %v512, 1
        %v811 = vrot.slane %v560, 1
        %v812 = vsel %vm797, %v810, %v811
        %v813 = vrot.slane %v513, 1
        %v814 = vrot.slane %v561, 1
        %v815 = vsel %vm797, %v813, %v814
        %v816 = vrot.slane %v514, 1
        %v817 = vrot.slane %v562, 1
        %v818 = vsel %vm797, %v816, %v817
        %v819 = vrot.slane %v515, 1
        %v820 = vrot.slane %v563, 1
        %v821 = vsel %vm797, %v819, %v820
        %v822 = vrot.slane %v516, 1
        %v823 = vrot.slane %v564, 1
        %v824 = vsel %vm797, %v822, %v823
        %v825 = vrot.slane %v517, 1
        %v826 = vrot.slane %v565, 1
        %v827 = vsel %vm797, %v825, %v826
        %v828 = vrot.slane %v518, 1
        %v829 = vrot.slane %v566, 1
        %v830 = vsel %vm797, %v828, %v829
        %v831 = vrot.slane %v519, 1
        %v832 = vrot.slane %v567, 1
        %v833 = vsel %vm797, %v831, %v832
        %v834 = vrot.slane %v520, 1
        %v835 = vrot.slane %v568, 1
        %v836 = vsel %vm797, %v834, %v835
        %v837 = vrot.slane %v521, 1
        %v838 = vrot.slane %v569, 1
        %v839 = vsel %vm797, %v837, %v838
        %v840 = vrot.slane %v522, 1
        %v841 = vrot.slane %v570, 1
        %v842 = vsel %vm797, %v840, %v841
        %v843 = vrot.slane %v523, 1
        %v844 = vrot.slane %v571, 1
        %v845 = vsel %vm797, %v843, %v844
        %846 = vrot.lane.b32.xlu0 %v800, 8
        %v847 = vpop.permute.xlu0 %846
        %848 = vrot.lane.b32.xlu0 %v803, 8
        %v849 = vpop.permute.xlu0 %848
        %850 = vrot.lane.b32.xlu0 %v806, 8
        %v851 = vpop.permute.xlu0 %850
        %852 = vrot.lane.b32.xlu0 %v809, 8
        %v853 = vpop.permute.xlu0 %852
        %854 = vrot.lane.b32.xlu0 %v812, 8
        %v855 = vpop.permute.xlu0 %854
        %856 = vrot.lane.b32.xlu0 %v815, 8
        %v857 = vpop.permute.xlu0 %856
        %858 = vrot.lane.b32.xlu0 %v818, 8
        %v859 = vpop.permute.xlu0 %858
        %860 = vrot.lane.b32.xlu0 %v821, 8
        %v861 = vpop.permute.xlu0 %860
        %862 = vrot.lane.b32.xlu0 %v824, 8
        %v863 = vpop.permute.xlu0 %862
        %864 = vrot.lane.b32.xlu0 %v827, 8
        %v865 = vpop.permute.xlu0 %864
        %866 = vrot.lane.b32.xlu0 %v830, 8
        %v867 = vpop.permute.xlu0 %866
        %868 = vrot.lane.b32.xlu0 %v833, 8
        %v869 = vpop.permute.xlu0 %868
        %870 = vrot.lane.b32.xlu0 %v836, 8
        %v871 = vpop.permute.xlu0 %870
        %872 = vrot.lane.b32.xlu0 %v839, 8
        %v873 = vpop.permute.xlu0 %872
        %874 = vrot.lane.b32.xlu0 %v842, 8
        %v875 = vpop.permute.xlu0 %874
        %876 = vrot.lane.b32.xlu0 %v845, 8
        %v877 = vpop.permute.xlu0 %876
        %v880 = vunpack.c.l.b16 %v438
        %v881 = vunpack.c.l.b16 %v439
        %v882 = vpack.c.b16 %v881, %v880
        %883 = vrot.lane.b32.xlu0 %v509, 12
        %v884 = vpop.permute.xlu0 %883
        %885 = vrot.lane.b32.xlu0 %v510, 12
        %v886 = vpop.permute.xlu0 %885
        %887 = vrot.lane.b32.xlu0 %v511, 12
        %v888 = vpop.permute.xlu0 %887
        %889 = vrot.lane.b32.xlu0 %v512, 12
        %v890 = vpop.permute.xlu0 %889
        %891 = vrot.lane.b32.xlu0 %v513, 12
        %v892 = vpop.permute.xlu0 %891
        %893 = vrot.lane.b32.xlu0 %v514, 12
        %v894 = vpop.permute.xlu0 %893
        %895 = vrot.lane.b32.xlu0 %v515, 12
        %v896 = vpop.permute.xlu0 %895
        %897 = vrot.lane.b32.xlu0 %v516, 12
        %v898 = vpop.permute.xlu0 %897
        %899 = vrot.lane.b32.xlu0 %v517, 12
        %v900 = vpop.permute.xlu0 %899
        %901 = vrot.lane.b32.xlu0 %v518, 12
        %v902 = vpop.permute.xlu0 %901
        %903 = vrot.lane.b32.xlu0 %v519, 12
        %v904 = vpop.permute.xlu0 %903
        %905 = vrot.lane.b32.xlu0 %v520, 12
        %v906 = vpop.permute.xlu0 %905
        %907 = vrot.lane.b32.xlu0 %v521, 12
        %v908 = vpop.permute.xlu0 %907
        %909 = vrot.lane.b32.xlu0 %v522, 12
        %v910 = vpop.permute.xlu0 %909
        %911 = vrot.lane.b32.xlu0 %v523, 12
        %v912 = vpop.permute.xlu0 %911
        %913 = vrot.lane.b32.xlu0 %v882, 12
        %v914 = vpop.permute.xlu0 %913
        %v916 = vunpack.c.l.b16 %v440
        %v917 = vpack.c.b16 %v916, %v916
        %v919 = vshrl.u32 %v882, 16
        %v921 = vshll.u32 %v882, 16
        %v923 = vrot.slane %v921, 1
        %v924 = vor.u32 %v919, %v923
        %v926 = vshll.u32 %v917, 16
        %v928 = vrot.slane %v926, 1
        %v929 = vsel %vm572, %v924, %v928
        %930 = vrot.lane.b32.xlu0 %v596, 16
        %v931 = vpop.permute.xlu0 %930
        %932 = vrot.lane.b32.xlu0 %v608, 16
        %v933 = vpop.permute.xlu0 %932
        %934 = vrot.lane.b32.xlu0 %v620, 16
        %v935 = vpop.permute.xlu0 %934
        %936 = vrot.lane.b32.xlu0 %v632, 16
        %v937 = vpop.permute.xlu0 %936
        %938 = vrot.lane.b32.xlu0 %v644, 16
        %v939 = vpop.permute.xlu0 %938
        %940 = vrot.lane.b32.xlu0 %v656, 16
        %v941 = vpop.permute.xlu0 %940
        %942 = vrot.lane.b32.xlu0 %v668, 16
        %v943 = vpop.permute.xlu0 %942
        %944 = vrot.lane.b32.xlu0 %v680, 16
        %v945 = vpop.permute.xlu0 %944
        %946 = vrot.lane.b32.xlu0 %v692, 16
        %v947 = vpop.permute.xlu0 %946
        %948 = vrot.lane.b32.xlu0 %v704, 16
        %v949 = vpop.permute.xlu0 %948
        %950 = vrot.lane.b32.xlu0 %v716, 16
        %v951 = vpop.permute.xlu0 %950
        %952 = vrot.lane.b32.xlu0 %v728, 16
        %v953 = vpop.permute.xlu0 %952
        %954 = vrot.lane.b32.xlu0 %v740, 16
        %v955 = vpop.permute.xlu0 %954
        %956 = vrot.lane.b32.xlu0 %v752, 16
        %v957 = vpop.permute.xlu0 %956
        %958 = vrot.lane.b32.xlu0 %v764, 16
        %v959 = vpop.permute.xlu0 %958
        %960 = vrot.lane.b32.xlu0 %v929, 16
        %v961 = vpop.permute.xlu0 %960
        %v962 = vrot.slane %v882, 1
        %v963 = vrot.slane %v917, 1
        %v964 = vsel %vm797, %v962, %v963
        %965 = vrot.lane.b32.xlu0 %v803, 20
        %v966 = vpop.permute.xlu0 %965
        %967 = vrot.lane.b32.xlu0 %v806, 20
        %v968 = vpop.permute.xlu0 %967
        %969 = vrot.lane.b32.xlu0 %v809, 20
        %v970 = vpop.permute.xlu0 %969
        %971 = vrot.lane.b32.xlu0 %v812, 20
        %v972 = vpop.permute.xlu0 %971
        %973 = vrot.lane.b32.xlu0 %v815, 20
        %v974 = vpop.permute.xlu0 %973
        %975 = vrot.lane.b32.xlu0 %v818, 20
        %v976 = vpop.permute.xlu0 %975
        %977 = vrot.lane.b32.xlu0 %v821, 20
        %v978 = vpop.permute.xlu0 %977
        %979 = vrot.lane.b32.xlu0 %v824, 20
        %v980 = vpop.permute.xlu0 %979
        %981 = vrot.lane.b32.xlu0 %v827, 20
        %v982 = vpop.permute.xlu0 %981
        %983 = vrot.lane.b32.xlu0 %v830, 20
        %v984 = vpop.permute.xlu0 %983
        %985 = vrot.lane.b32.xlu0 %v833, 20
        %v986 = vpop.permute.xlu0 %985
        %987 = vrot.lane.b32.xlu0 %v836, 20
        %v988 = vpop.permute.xlu0 %987
        %989 = vrot.lane.b32.xlu0 %v839, 20
        %v990 = vpop.permute.xlu0 %989
        %991 = vrot.lane.b32.xlu0 %v842, 20
        %v992 = vpop.permute.xlu0 %991
        %993 = vrot.lane.b32.xlu0 %v845, 20
        %v994 = vpop.permute.xlu0 %993
        %995 = vrot.lane.b32.xlu0 %v964, 20
        %v996 = vpop.permute.xlu0 %995
        %v999 = vunpack.c.l.b16 %v441
        %v1000 = vunpack.c.l.b16 %v442
        %v1001 = vpack.c.b16 %v1000, %v999
        %1002 = vrot.lane.b32.xlu0 %v510, 24
        %v1003 = vpop.permute.xlu0 %1002
        %1004 = vrot.lane.b32.xlu0 %v511, 24
        %v1005 = vpop.permute.xlu0 %1004
        %1006 = vrot.lane.b32.xlu0 %v512, 24
        %v1007 = vpop.permute.xlu0 %1006
        %1008 = vrot.lane.b32.xlu0 %v513, 24
        %v1009 = vpop.permute.xlu0 %1008
        %1010 = vrot.lane.b32.xlu0 %v514, 24
        %v1011 = vpop.permute.xlu0 %1010
        %1012 = vrot.lane.b32.xlu0 %v515, 24
        %v1013 = vpop.permute.xlu0 %1012
        %1014 = vrot.lane.b32.xlu0 %v516, 24
        %v1015 = vpop.permute.xlu0 %1014
        %1016 = vrot.lane.b32.xlu0 %v517, 24
        %v1017 = vpop.permute.xlu0 %1016
        %1018 = vrot.lane.b32.xlu0 %v518, 24
        %v1019 = vpop.permute.xlu0 %1018
        %1020 = vrot.lane.b32.xlu0 %v519, 24
        %v1021 = vpop.permute.xlu0 %1020
        %1022 = vrot.lane.b32.xlu0 %v520, 24
        %v1023 = vpop.permute.xlu0 %1022
        %1024 = vrot.lane.b32.xlu0 %v521, 24
        %v1025 = vpop.permute.xlu0 %1024
        %1026 = vrot.lane.b32.xlu0 %v522, 24
        %v1027 = vpop.permute.xlu0 %1026
        %1028 = vrot.lane.b32.xlu0 %v523, 24
        %v1029 = vpop.permute.xlu0 %1028
        %1030 = vrot.lane.b32.xlu0 %v882, 24
        %v1031 = vpop.permute.xlu0 %1030
        %1032 = vrot.lane.b32.xlu0 %v1001, 24
        %v1033 = vpop.permute.xlu0 %1032
        %v1035 = vunpack.c.l.b16 %v443
        %v1036 = vpack.c.b16 %v1035, %v1035
        %v1038 = vshrl.u32 %v1001, 16
        %v1040 = vshll.u32 %v1001, 16
        %v1042 = vrot.slane %v1040, 1
        %v1043 = vor.u32 %v1038, %v1042
        %v1045 = vshll.u32 %v1036, 16
        %v1047 = vrot.slane %v1045, 1
        %v1048 = vsel %vm572, %v1043, %v1047
        %1049 = vrot.lane.b32.xlu0 %v608, 28
        %v1050 = vpop.permute.xlu0 %1049
        %1051 = vrot.lane.b32.xlu0 %v620, 28
        %v1052 = vpop.permute.xlu0 %1051
        %1053 = vrot.lane.b32.xlu0 %v632, 28
        %v1054 = vpop.permute.xlu0 %1053
        %1055 = vrot.lane.b32.xlu0 %v644, 28
        %v1056 = vpop.permute.xlu0 %1055
        %1057 = vrot.lane.b32.xlu0 %v656, 28
        %v1058 = vpop.permute.xlu0 %1057
        %1059 = vrot.lane.b32.xlu0 %v668, 28
        %v1060 = vpop.permute.xlu0 %1059
        %1061 = vrot.lane.b32.xlu0 %v680, 28
        %v1062 = vpop.permute.xlu0 %1061
        %1063 = vrot.lane.b32.xlu0 %v692, 28
        %v1064 = vpop.permute.xlu0 %1063
        %1065 = vrot.lane.b32.xlu0 %v704, 28
        %v1066 = vpop.permute.xlu0 %1065
        %1067 = vrot.lane.b32.xlu0 %v716, 28
        %v1068 = vpop.permute.xlu0 %1067
        %1069 = vrot.lane.b32.xlu0 %v728, 28
        %v1070 = vpop.permute.xlu0 %1069
        %1071 = vrot.lane.b32.xlu0 %v740, 28
        %v1072 = vpop.permute.xlu0 %1071
        %1073 = vrot.lane.b32.xlu0 %v752, 28
        %v1074 = vpop.permute.xlu0 %1073
        %1075 = vrot.lane.b32.xlu0 %v764, 28
        %v1076 = vpop.permute.xlu0 %1075
        %1077 = vrot.lane.b32.xlu0 %v929, 28
        %v1078 = vpop.permute.xlu0 %1077
        %1079 = vrot.lane.b32.xlu0 %v1048, 28
        %v1080 = vpop.permute.xlu0 %1079
        %v1081 = vrot.slane %v1001, 1
        %v1082 = vrot.slane %v1036, 1
        %v1083 = vsel %vm797, %v1081, %v1082
        %1084 = vrot.lane.b32.xlu0 %v806, 32
        %v1085 = vpop.permute.xlu0 %1084
        %1086 = vrot.lane.b32.xlu0 %v809, 32
        %v1087 = vpop.permute.xlu0 %1086
        %1088 = vrot.lane.b32.xlu0 %v812, 32
        %v1089 = vpop.permute.xlu0 %1088
        %1090 = vrot.lane.b32.xlu0 %v815, 32
        %v1091 = vpop.permute.xlu0 %1090
        %1092 = vrot.lane.b32.xlu0 %v818, 32
        %v1093 = vpop.permute.xlu0 %1092
        %1094 = vrot.lane.b32.xlu0 %v821, 32
        %v1095 = vpop.permute.xlu0 %1094
        %1096 = vrot.lane.b32.xlu0 %v824, 32
        %v1097 = vpop.permute.xlu0 %1096
        %1098 = vrot.lane.b32.xlu0 %v827, 32
        %v1099 = vpop.permute.xlu0 %1098
        %1100 = vrot.lane.b32.xlu0 %v830, 32
        %v1101 = vpop.permute.xlu0 %1100
        %1102 = vrot.lane.b32.xlu0 %v833, 32
        %v1103 = vpop.permute.xlu0 %1102
        %1104 = vrot.lane.b32.xlu0 %v836, 32
        %v1105 = vpop.permute.xlu0 %1104
        %1106 = vrot.lane.b32.xlu0 %v839, 32
        %v1107 = vpop.permute.xlu0 %1106
        %1108 = vrot.lane.b32.xlu0 %v842, 32
        %v1109 = vpop.permute.xlu0 %1108
        %1110 = vrot.lane.b32.xlu0 %v845, 32
        %v1111 = vpop.permute.xlu0 %1110
        %1112 = vrot.lane.b32.xlu0 %v964, 32
        %v1113 = vpop.permute.xlu0 %1112
        %1114 = vrot.lane.b32.xlu0 %v1083, 32
        %v1115 = vpop.permute.xlu0 %1114
        %vm1116 = vcmask 31744
        %v1118 = vsel %vm1116, %v508, %v766
        %v1120 = vsel %vm1116, %v509, %v768
        %v1122 = vsel %vm1116, %v510, %v770
        %v1124 = vsel %vm1116, %v511, %v772
        %v1126 = vsel %vm1116, %v512, %v774
        %v1128 = vsel %vm1116, %v513, %v776
        %v1130 = vsel %vm1116, %v514, %v778
        %v1132 = vsel %vm1116, %v515, %v780
        %v1134 = vsel %vm1116, %v516, %v782
        %v1136 = vsel %vm1116, %v517, %v784
        %v1138 = vsel %vm1116, %v518, %v786
        %v1140 = vsel %vm1116, %v519, %v788
        %v1142 = vsel %vm1116, %v520, %v790
        %v1144 = vsel %vm1116, %v521, %v792
        %v1146 = vsel %vm1116, %v522, %v794
        %v1148 = vsel %vm1116, %v523, %v796
        %vm1149 = vcmask 64512
        %v1151 = vsel %vm1149, %v1118, %v847
        %v1153 = vsel %vm1149, %v1120, %v849
        %v1155 = vsel %vm1149, %v1122, %v851
        %v1157 = vsel %vm1149, %v1124, %v853
        %v1159 = vsel %vm1149, %v1126, %v855
        %v1161 = vsel %vm1149, %v1128, %v857
        %v1163 = vsel %vm1149, %v1130, %v859
        %v1165 = vsel %vm1149, %v1132, %v861
        %v1167 = vsel %vm1149, %v1134, %v863
        %v1169 = vsel %vm1149, %v1136, %v865
        %v1171 = vsel %vm1149, %v1138, %v867
        %v1173 = vsel %vm1149, %v1140, %v869
        %v1175 = vsel %vm1149, %v1142, %v871
        %v1177 = vsel %vm1149, %v1144, %v873
        %v1179 = vsel %vm1149, %v1146, %v875
        %v1181 = vsel %vm1149, %v1148, %v877
        %vm1182 = vcmask 97280
        %v1184 = vsel %vm1182, %v1151, %v884
        %v1186 = vsel %vm1182, %v1153, %v886
        %v1188 = vsel %vm1182, %v1155, %v888
        %v1190 = vsel %vm1182, %v1157, %v890
        %v1192 = vsel %vm1182, %v1159, %v892
        %v1194 = vsel %vm1182, %v1161, %v894
        %v1196 = vsel %vm1182, %v1163, %v896
        %v1198 = vsel %vm1182, %v1165, %v898
        %v1200 = vsel %vm1182, %v1167, %v900
        %v1202 = vsel %vm1182, %v1169, %v902
        %v1204 = vsel %vm1182, %v1171, %v904
        %v1206 = vsel %vm1182, %v1173, %v906
        %v1208 = vsel %vm1182, %v1175, %v908
        %v1210 = vsel %vm1182, %v1177, %v910
        %v1212 = vsel %vm1182, %v1179, %v912
        %v1214 = vsel %vm1182, %v1181, %v914
        %vm1215 = vcmask 130048
        %v1217 = vsel %vm1215, %v1184, %v931
        %v1219 = vsel %vm1215, %v1186, %v933
        %v1221 = vsel %vm1215, %v1188, %v935
        %v1223 = vsel %vm1215, %v1190, %v937
        %v1225 = vsel %vm1215, %v1192, %v939
        %v1227 = vsel %vm1215, %v1194, %v941
        %v1229 = vsel %vm1215, %v1196, %v943
        %v1231 = vsel %vm1215, %v1198, %v945
        %v1233 = vsel %vm1215, %v1200, %v947
        %v1235 = vsel %vm1215, %v1202, %v949
        %v1237 = vsel %vm1215, %v1204, %v951
        %v1239 = vsel %vm1215, %v1206, %v953
        %v1241 = vsel %vm1215, %v1208, %v955
        %v1243 = vsel %vm1215, %v1210, %v957
        %v1245 = vsel %vm1215, %v1212, %v959
        %v1247 = vsel %vm1215, %v1214, %v961
        %vm1248 = vcmask 162816
        %v1250 = vsel %vm1248, %v1217, %v966
        %v1252 = vsel %vm1248, %v1219, %v968
        %v1254 = vsel %vm1248, %v1221, %v970
        %v1256 = vsel %vm1248, %v1223, %v972
        %v1258 = vsel %vm1248, %v1225, %v974
        %v1260 = vsel %vm1248, %v1227, %v976
        %v1262 = vsel %vm1248, %v1229, %v978
        %v1264 = vsel %vm1248, %v1231, %v980
        %v1266 = vsel %vm1248, %v1233, %v982
        %v1268 = vsel %vm1248, %v1235, %v984
        %v1270 = vsel %vm1248, %v1237, %v986
        %v1272 = vsel %vm1248, %v1239, %v988
        %v1274 = vsel %vm1248, %v1241, %v990
        %v1276 = vsel %vm1248, %v1243, %v992
        %v1278 = vsel %vm1248, %v1245, %v994
        %v1280 = vsel %vm1248, %v1247, %v996
        %vm1281 = vcmask 195584
        %v1283 = vsel %vm1281, %v1250, %v1003
        %v1285 = vsel %vm1281, %v1252, %v1005
        %v1287 = vsel %vm1281, %v1254, %v1007
        %v1289 = vsel %vm1281, %v1256, %v1009
        %v1291 = vsel %vm1281, %v1258, %v1011
        %v1293 = vsel %vm1281, %v1260, %v1013
        %v1295 = vsel %vm1281, %v1262, %v1015
        %v1297 = vsel %vm1281, %v1264, %v1017
        %v1299 = vsel %vm1281, %v1266, %v1019
        %v1301 = vsel %vm1281, %v1268, %v1021
        %v1303 = vsel %vm1281, %v1270, %v1023
        %v1305 = vsel %vm1281, %v1272, %v1025
        %v1307 = vsel %vm1281, %v1274, %v1027
        %v1309 = vsel %vm1281, %v1276, %v1029
        %v1311 = vsel %vm1281, %v1278, %v1031
        %v1313 = vsel %vm1281, %v1280, %v1033
        %vm1314 = vcmask 228352
        %v1316 = vsel %vm1314, %v1283, %v1050
        %v1318 = vsel %vm1314, %v1285, %v1052
        %v1320 = vsel %vm1314, %v1287, %v1054
        %v1322 = vsel %vm1314, %v1289, %v1056
        %v1324 = vsel %vm1314, %v1291, %v1058
        %v1326 = vsel %vm1314, %v1293, %v1060
        %v1328 = vsel %vm1314, %v1295, %v1062
        %v1330 = vsel %vm1314, %v1297, %v1064
        %v1332 = vsel %vm1314, %v1299, %v1066
        %v1334 = vsel %vm1314, %v1301, %v1068
        %v1336 = vsel %vm1314, %v1303, %v1070
        %v1338 = vsel %vm1314, %v1305, %v1072
        %v1340 = vsel %vm1314, %v1307, %v1074
        %v1342 = vsel %vm1314, %v1309, %v1076
        %v1344 = vsel %vm1314, %v1311, %v1078
        %v1346 = vsel %vm1314, %v1313, %v1080
        %vm1347 = vcmask 261120
        %v1349 = vsel %vm1347, %v1316, %v1085
        %v1351 = vsel %vm1347, %v1318, %v1087
        %v1353 = vsel %vm1347, %v1320, %v1089
        %v1355 = vsel %vm1347, %v1322, %v1091
        %v1357 = vsel %vm1347, %v1324, %v1093
        %v1359 = vsel %vm1347, %v1326, %v1095
        %v1361 = vsel %vm1347, %v1328, %v1097
        %v1363 = vsel %vm1347, %v1330, %v1099
        %v1365 = vsel %vm1347, %v1332, %v1101
        %v1367 = vsel %vm1347, %v1334, %v1103
        %v1369 = vsel %vm1347, %v1336, %v1105
        %v1371 = vsel %vm1347, %v1338, %v1107
        %v1373 = vsel %vm1347, %v1340, %v1109
        %v1375 = vsel %vm1347, %v1342, %v1111
        %v1377 = vsel %vm1347, %v1344, %v1113
        %v1379 = vsel %vm1347, %v1346, %v1115
        %v1380 = vld [vmem:[%s381] sm:$0xf]
        %v1381 = vld [vmem:[%s381 + $0x4] sm:$0xf]
        %v1382 = vld [vmem:[%s381 + $0x8] sm:$0xf]
        %v1383 = vld [vmem:[%s381 + $0xc] sm:$0xf]
        %v1384 = vld [vmem:[%s381 + $0x10] sm:$0x3]
        %v1390 = vunpack.c.l.b16 %v1380
        %v1391 = vunpack.c.l.b16 %v1381
        %v1392 = vunpack.c.l.b16 %v1382
        %v1393 = vunpack.c.l.b16 %v1383
        %v1394 = vunpack.c.l.b16 %v1384
        %v1395 = vpack.c.b16 %v1391, %v1390
        %v1396 = vpack.c.b16 %v1393, %v1392
        %v1397 = vpack.c.b16 %v1394, %v1394
        %vm1400 = vcmask 293888
        %v1401 = vsel %vm1400, %v1349, 0
        %v1403 = vsel %vm1400, %v1351, 0
        %v1405 = vsel %vm1400, %v1353, 0
        %v1407 = vsel %vm1400, %v1355, 0
        %v1409 = vsel %vm1400, %v1357, 0
        %v1411 = vsel %vm1400, %v1359, 0
        %v1413 = vsel %vm1400, %v1361, 0
        %v1415 = vsel %vm1400, %v1363, 0
        %v1417 = vsel %vm1400, %v1365, 0
        %v1419 = vsel %vm1400, %v1367, 0
        %v1421 = vsel %vm1400, %v1369, 0
        %v1423 = vsel %vm1400, %v1371, 0
        %v1425 = vsel %vm1400, %v1373, 0
        %v1427 = vsel %vm1400, %v1375, 0
        %v1429 = vsel %vm1400, %v1377, 0
        %v1431 = vsel %vm1400, %v1379, 0
        %vm1433 = vcmask 1041408
        %v1435 = vsel %vm1433, %v1397, 0
        %1437 = vmatprep.subr.bf16.mxu0 0
        %1438 = vmatpush1.bf16.msra.mxu0 %v1395
        %1439 = vmatprep.subr.bf16.mxu0 0
        %1440 = vmatpush1.bf16.msra.mxu0 %v1396
        %1441 = vmatprep.subr.bf16.mxu0 0
        %1442 = vmatpush1.bf16.msra.mxu0 %v1435
        %1443 = vmatprep.subr.bf16.mxu0 0
        %1444 = vmatpush1.bf16.msra.mxu0 0
        %1445 = vmatprep.subr.bf16.mxu0 0
        %1446 = vmatpush1.bf16.msra.mxu0 0
        %1447 = vmatprep.subr.bf16.mxu0 0
        %1448 = vmatpush1.bf16.msra.mxu0 0
        %1449 = vmatprep.subr.bf16.mxu0 0
        %1450 = vmatpush1.bf16.msra.mxu0 0
        %1451 = vmatprep.subr.bf16.mxu0 0
        %1452 = vmatpush1.bf16.msra.mxu0 0
        %1453 = vmatprep.subr.bf16.mxu0 0
        %1454 = vmatpush1.bf16.msra.mxu0 0
        %1455 = vmatprep.subr.bf16.mxu0 0
        %1456 = vmatpush1.bf16.msra.mxu0 0
        %1457 = vmatprep.subr.bf16.mxu0 0
        %1458 = vmatpush1.bf16.msra.mxu0 0
        %1459 = vmatprep.subr.bf16.mxu0 0
        %1460 = vmatpush1.bf16.msra.mxu0 0
        %1461 = vmatprep.subr.bf16.mxu0 0
        %1462 = vmatpush1.bf16.msra.mxu0 0
        %1463 = vmatprep.subr.bf16.mxu0 0
        %1464 = vmatpush1.bf16.msra.mxu0 0
        %1465 = vmatprep.subr.bf16.mxu0 0
        %1466 = vmatpush1.bf16.msra.mxu0 0
        %1467 = vmatprep.subr.bf16.mxu0 0
        %1468 = vmatpush1.bf16.msra.mxu0 0
        %1469 = vmatprep.mubr.bf16.mxu0 0
        %1470 = vmatmul.mubr.bf16.gmra.mrb[0].mxu0 %v1401
        %v1471 = vpop.f32.mrb[0].mxu0
        %v1472 = vadd.f32 0.0, %v1471
        %v1473 = vpop.f32.mrb[0].mxu0
        %v1474 = vpop.f32.mrb[0].mxu0
        %v1475 = vadd.f32 0.0, %v1474
        %v1476 = vpop.f32.mrb[0].mxu0
        %1477 = vmatprep.mubr.bf16.mxu0 0
        %1478 = vmatmul.mubr.bf16.gmra.mrb[0].mxu0 %v1403
        %v1479 = vpop.f32.mrb[0].mxu0
        %v1480 = vadd.f32 0.0, %v1479
        %v1481 = vpop.f32.mrb[0].mxu0
        %v1482 = vpop.f32.mrb[0].mxu0
        %v1483 = vadd.f32 0.0, %v1482
        %v1484 = vpop.f32.mrb[0].mxu0
        %1485 = vmatprep.mubr.bf16.mxu0 0
        %1486 = vmatmul.mubr.bf16.gmra.mrb[0].mxu0 %v1405
        %v1487 = vpop.f32.mrb[0].mxu0
        %v1488 = vadd.f32 0.0, %v1487
        %v1489 = vpop.f32.mrb[0].mxu0
        %v1490 = vpop.f32.mrb[0].mxu0
        %v1491 = vadd.f32 0.0, %v1490
        %v1492 = vpop.f32.mrb[0].mxu0
        %1493 = vmatprep.mubr.bf16.mxu0 0
        %1494 = vmatmul.mubr.bf16.gmra.mrb[0].mxu0 %v1407
        %v1495 = vpop.f32.mrb[0].mxu0
        %v1496 = vadd.f32 0.0, %v1495
        %v1497 = vpop.f32.mrb[0].mxu0
        %v1498 = vpop.f32.mrb[0].mxu0
        %v1499 = vadd.f32 0.0, %v1498
        %v1500 = vpop.f32.mrb[0].mxu0
        %1501 = vmatprep.mubr.bf16.mxu0 0
        %1502 = vmatmul.mubr.bf16.gmra.mrb[0].mxu0 %v1409
        %v1503 = vpop.f32.mrb[0].mxu0
        %v1504 = vadd.f32 0.0, %v1503
        %v1505 = vpop.f32.mrb[0].mxu0
        %v1506 = vpop.f32.mrb[0].mxu0
        %v1507 = vadd.f32 0.0, %v1506
        %v1508 = vpop.f32.mrb[0].mxu0
        %1509 = vmatprep.mubr.bf16.mxu0 0
        %1510 = vmatmul.mubr.bf16.gmra.mrb[0].mxu0 %v1411
        %v1511 = vpop.f32.mrb[0].mxu0
        %v1512 = vadd.f32 0.0, %v1511
        %v1513 = vpop.f32.mrb[0].mxu0
        %v1514 = vpop.f32.mrb[0].mxu0
        %v1515 = vadd.f32 0.0, %v1514
        %v1516 = vpop.f32.mrb[0].mxu0
        %1517 = vmatprep.mubr.bf16.mxu0 0
        %1518 = vmatmul.mubr.bf16.gmra.mrb[0].mxu0 %v1413
        %v1519 = vpop.f32.mrb[0].mxu0
        %v1520 = vadd.f32 0.0, %v1519
        %v1521 = vpop.f32.mrb[0].mxu0
        %v1522 = vpop.f32.mrb[0].mxu0
        %v1523 = vadd.f32 0.0, %v1522
        %v1524 = vpop.f32.mrb[0].mxu0
        %1525 = vmatprep.mubr.bf16.mxu0 0
        %1526 = vmatmul.mubr.bf16.gmra.mrb[0].mxu0 %v1415
        %v1527 = vpop.f32.mrb[0].mxu0
        %v1528 = vadd.f32 0.0, %v1527
        %v1529 = vpop.f32.mrb[0].mxu0
        %v1530 = vpop.f32.mrb[0].mxu0
        %v1531 = vadd.f32 0.0, %v1530
        %v1532 = vpop.f32.mrb[0].mxu0
        %1533 = vmatprep.mubr.bf16.mxu0 0
        %1534 = vmatmul.mubr.bf16.gmra.mrb[0].mxu0 %v1417
        %v1535 = vpop.f32.mrb[0].mxu0
        %v1536 = vadd.f32 0.0, %v1535
        %v1537 = vpop.f32.mrb[0].mxu0
        %v1538 = vpop.f32.mrb[0].mxu0
        %v1539 = vadd.f32 0.0, %v1538
        %v1540 = vpop.f32.mrb[0].mxu0
        %1541 = vmatprep.mubr.bf16.mxu0 0
        %1542 = vmatmul.mubr.bf16.gmra.mrb[0].mxu0 %v1419
        %v1543 = vpop.f32.mrb[0].mxu0
        %v1544 = vadd.f32 0.0, %v1543
        %v1545 = vpop.f32.mrb[0].mxu0
        %v1546 = vpop.f32.mrb[0].mxu0
        %v1547 = vadd.f32 0.0, %v1546
        %v1548 = vpop.f32.mrb[0].mxu0
        %1549 = vmatprep.mubr.bf16.mxu0 0
        %1550 = vmatmul.mubr.bf16.gmra.mrb[0].mxu0 %v1421
        %v1551 = vpop.f32.mrb[0].mxu0
        %v1552 = vadd.f32 0.0, %v1551
        %v1553 = vpop.f32.mrb[0].mxu0
        %v1554 = vpop.f32.mrb[0].mxu0
        %v1555 = vadd.f32 0.0, %v1554
        %v1556 = vpop.f32.mrb[0].mxu0
        %1557 = vmatprep.mubr.bf16.mxu0 0
        %1558 = vmatmul.mubr.bf16.gmra.mrb[0].mxu0 %v1423
        %v1559 = vpop.f32.mrb[0].mxu0
        %v1560 = vadd.f32 0.0, %v1559
        %v1561 = vpop.f32.mrb[0].mxu0
        %v1562 = vpop.f32.mrb[0].mxu0
        %v1563 = vadd.f32 0.0, %v1562
        %v1564 = vpop.f32.mrb[0].mxu0
        %1565 = vmatprep.mubr.bf16.mxu0 0
        %1566 = vmatmul.mubr.bf16.gmra.mrb[0].mxu0 %v1425
        %v1567 = vpop.f32.mrb[0].mxu0
        %v1568 = vadd.f32 0.0, %v1567
        %v1569 = vpop.f32.mrb[0].mxu0
        %v1570 = vpop.f32.mrb[0].mxu0
        %v1571 = vadd.f32 0.0, %v1570
        %v1572 = vpop.f32.mrb[0].mxu0
        %1573 = vmatprep.mubr.bf16.mxu0 0
        %1574 = vmatmul.mubr.bf16.gmra.mrb[0].mxu0 %v1427
        %v1575 = vpop.f32.mrb[0].mxu0
        %v1576 = vadd.f32 0.0, %v1575
        %v1577 = vpop.f32.mrb[0].mxu0
        %v1578 = vpop.f32.mrb[0].mxu0
        %v1579 = vadd.f32 0.0, %v1578
        %v1580 = vpop.f32.mrb[0].mxu0
        %1581 = vmatprep.mubr.bf16.mxu0 0
        %1582 = vmatmul.mubr.bf16.gmra.mrb[0].mxu0 %v1429
        %v1583 = vpop.f32.mrb[0].mxu0
        %v1584 = vadd.f32 0.0, %v1583
        %v1585 = vpop.f32.mrb[0].mxu0
        %v1586 = vpop.f32.mrb[0].mxu0
        %v1587 = vadd.f32 0.0, %v1586
        %v1588 = vpop.f32.mrb[0].mxu0
        %1589 = vmatprep.mubr.bf16.mxu0 0
        %1590 = vmatmul.mubr.bf16.gmra.mrb[0].mxu0 %v1431
        %v1591 = vpop.f32.mrb[0].mxu0
        %v1592 = vadd.f32 0.0, %v1591
        %v1593 = vpop.f32.mrb[0].mxu0
        %v1594 = vpop.f32.mrb[0].mxu0
        %v1595 = vadd.f32 0.0, %v1594
        %v1596 = vpop.f32.mrb[0].mxu0
        %1597 = vdwg.mxu0
        %v1598 = vld [vmem:[%s384] sm:$0x1]
        %v1600 = vlaneseq
        %v1601 = vshrl.u32 %v1600, 7
        %v1602 = vsub.s32 0, %v1601
        %v1603 = vrot.slane %v1598, %v1602
        %v1605 = vmul.f32 %v1472, %v1603
        %v1606 = vmul.f32 %v1475, %v1603
        %v1607 = vmul.f32 %v1480, %v1603
        %v1608 = vmul.f32 %v1483, %v1603
        %v1609 = vmul.f32 %v1488, %v1603
        %v1610 = vmul.f32 %v1491, %v1603
        %v1611 = vmul.f32 %v1496, %v1603
        %v1612 = vmul.f32 %v1499, %v1603
        %v1613 = vmul.f32 %v1504, %v1603
        %v1614 = vmul.f32 %v1507, %v1603
        %v1615 = vmul.f32 %v1512, %v1603
        %v1616 = vmul.f32 %v1515, %v1603
        %v1617 = vmul.f32 %v1520, %v1603
        %v1618 = vmul.f32 %v1523, %v1603
        %v1619 = vmul.f32 %v1528, %v1603
        %v1620 = vmul.f32 %v1531, %v1603
        %v1621 = vmul.f32 %v1536, %v1603
        %v1622 = vmul.f32 %v1539, %v1603
        %v1623 = vmul.f32 %v1544, %v1603
        %v1624 = vmul.f32 %v1547, %v1603
        %v1625 = vmul.f32 %v1552, %v1603
        %v1626 = vmul.f32 %v1555, %v1603
        %v1627 = vmul.f32 %v1560, %v1603
        %v1628 = vmul.f32 %v1563, %v1603
        %v1629 = vmul.f32 %v1568, %v1603
        %v1630 = vmul.f32 %v1571, %v1603
        %v1631 = vmul.f32 %v1576, %v1603
        %v1632 = vmul.f32 %v1579, %v1603
        %v1633 = vmul.f32 %v1584, %v1603
        %v1634 = vmul.f32 %v1587, %v1603
        %v1635 = vmul.f32 %v1592, %v1603
        %v1636 = vmul.f32 %v1595, %v1603
        %v1637 = vld [vmem:[%s387] sm:$0x1]
        %v1639 = vlaneseq
        %v1640 = vshrl.u32 %v1639, 7
        %v1641 = vsub.s32 0, %v1640
        %v1642 = vrot.slane %v1637, %v1641
        %v1644 = vadd.f32 %v1605, %v1642
        %v1645 = vadd.f32 %v1606, %v1642
        %v1646 = vadd.f32 %v1607, %v1642
        %v1647 = vadd.f32 %v1608, %v1642
        %v1648 = vadd.f32 %v1609, %v1642
        %v1649 = vadd.f32 %v1610, %v1642
        %v1650 = vadd.f32 %v1611, %v1642
        %v1651 = vadd.f32 %v1612, %v1642
        %v1652 = vadd.f32 %v1613, %v1642
        %v1653 = vadd.f32 %v1614, %v1642
        %v1654 = vadd.f32 %v1615, %v1642
        %v1655 = vadd.f32 %v1616, %v1642
        %v1656 = vadd.f32 %v1617, %v1642
        %v1657 = vadd.f32 %v1618, %v1642
        %v1658 = vadd.f32 %v1619, %v1642
        %v1659 = vadd.f32 %v1620, %v1642
        %v1660 = vadd.f32 %v1621, %v1642
        %v1661 = vadd.f32 %v1622, %v1642
        %v1662 = vadd.f32 %v1623, %v1642
        %v1663 = vadd.f32 %v1624, %v1642
        %v1664 = vadd.f32 %v1625, %v1642
        %v1665 = vadd.f32 %v1626, %v1642
        %v1666 = vadd.f32 %v1627, %v1642
        %v1667 = vadd.f32 %v1628, %v1642
        %v1668 = vadd.f32 %v1629, %v1642
        %v1669 = vadd.f32 %v1630, %v1642
        %v1670 = vadd.f32 %v1631, %v1642
        %v1671 = vadd.f32 %v1632, %v1642
        %v1672 = vadd.f32 %v1633, %v1642
        %v1673 = vadd.f32 %v1634, %v1642
        %v1674 = vadd.f32 %v1635, %v1642
        %v1675 = vadd.f32 %v1636, %v1642
        %v1676 = vmax.f32 %v1644, 0.0
        %v1677 = vmax.f32 %v1645, 0.0
        %v1678 = vmax.f32 %v1646, 0.0
        %v1679 = vmax.f32 %v1647, 0.0
        %v1680 = vmax.f32 %v1648, 0.0
        %v1681 = vmax.f32 %v1649, 0.0
        %v1682 = vmax.f32 %v1650, 0.0
        %v1683 = vmax.f32 %v1651, 0.0
        %v1684 = vmax.f32 %v1652, 0.0
        %v1685 = vmax.f32 %v1653, 0.0
        %v1686 = vmax.f32 %v1654, 0.0
        %v1687 = vmax.f32 %v1655, 0.0
        %v1688 = vmax.f32 %v1656, 0.0
        %v1689 = vmax.f32 %v1657, 0.0
        %v1690 = vmax.f32 %v1658, 0.0
        %v1691 = vmax.f32 %v1659, 0.0
        %v1692 = vmax.f32 %v1660, 0.0
        %v1693 = vmax.f32 %v1661, 0.0
        %v1694 = vmax.f32 %v1662, 0.0
        %v1695 = vmax.f32 %v1663, 0.0
        %v1696 = vmax.f32 %v1664, 0.0
        %v1697 = vmax.f32 %v1665, 0.0
        %v1698 = vmax.f32 %v1666, 0.0
        %v1699 = vmax.f32 %v1667, 0.0
        %v1700 = vmax.f32 %v1668, 0.0
        %v1701 = vmax.f32 %v1669, 0.0
        %v1702 = vmax.f32 %v1670, 0.0
        %v1703 = vmax.f32 %v1671, 0.0
        %v1704 = vmax.f32 %v1672, 0.0
        %v1705 = vmax.f32 %v1673, 0.0
        %v1706 = vmax.f32 %v1674, 0.0
        %v1707 = vmax.f32 %v1675, 0.0
        %v1708 = vpack.c.bf16 %v1677, %v1676
        %v1709 = vpack.c.bf16 %v1679, %v1678
        %v1710 = vpack.c.bf16 %v1681, %v1680
        %v1711 = vpack.c.bf16 %v1683, %v1682
        %v1712 = vpack.c.bf16 %v1685, %v1684
        %v1713 = vpack.c.bf16 %v1687, %v1686
        %v1714 = vpack.c.bf16 %v1689, %v1688
        %v1715 = vpack.c.bf16 %v1691, %v1690
        %v1716 = vpack.c.bf16 %v1693, %v1692
        %v1717 = vpack.c.bf16 %v1695, %v1694
        %v1718 = vpack.c.bf16 %v1697, %v1696
        %v1719 = vpack.c.bf16 %v1699, %v1698
        %v1720 = vpack.c.bf16 %v1701, %v1700
        %v1721 = vpack.c.bf16 %v1703, %v1702
        %v1722 = vpack.c.bf16 %v1705, %v1704
        %v1723 = vpack.c.bf16 %v1707, %v1706
        %v1740 = vunpack.c.l.b16 %v1708
        %v1741 = vunpack.c.h.b16 %v1708
        %v1742 = vunpack.c.l.b16 %v1709
        %v1743 = vunpack.c.h.b16 %v1709
        %v1744 = vunpack.c.l.b16 %v1710
        %v1745 = vunpack.c.h.b16 %v1710
        %v1746 = vunpack.c.l.b16 %v1711
        %v1747 = vunpack.c.h.b16 %v1711
        %v1748 = vunpack.c.l.b16 %v1712
        %v1749 = vunpack.c.h.b16 %v1712
        %v1750 = vunpack.c.l.b16 %v1713
        %v1751 = vunpack.c.h.b16 %v1713
        %v1752 = vunpack.c.l.b16 %v1714
        %v1753 = vunpack.c.h.b16 %v1714
        %v1754 = vunpack.c.l.b16 %v1715
        %v1755 = vunpack.c.h.b16 %v1715
        %v1756 = vunpack.c.l.b16 %v1716
        %v1757 = vunpack.c.h.b16 %v1716
        %v1758 = vunpack.c.l.b16 %v1717
        %v1759 = vunpack.c.h.b16 %v1717
        %v1760 = vunpack.c.l.b16 %v1718
        %v1761 = vunpack.c.h.b16 %v1718
        %v1762 = vunpack.c.l.b16 %v1719
        %v1763 = vunpack.c.h.b16 %v1719
        %v1764 = vunpack.c.l.b16 %v1720
        %v1765 = vunpack.c.h.b16 %v1720
        %v1766 = vunpack.c.l.b16 %v1721
        %v1767 = vunpack.c.h.b16 %v1721
        %v1768 = vunpack.c.l.b16 %v1722
        %v1769 = vunpack.c.h.b16 %v1722
        %v1770 = vunpack.c.l.b16 %v1723
        %v1771 = vunpack.c.h.b16 %v1723
        %v1772 = vpack.c.b16 %v1740, %v1740
        %v1773 = vpack.c.b16 %v1741, %v1741
        %v1774 = vpack.c.b16 %v1742, %v1742
        %v1775 = vpack.c.b16 %v1743, %v1743
        %v1776 = vpack.c.b16 %v1744, %v1744
        %v1777 = vpack.c.b16 %v1745, %v1745
        %v1778 = vpack.c.b16 %v1746, %v1746
        %v1779 = vpack.c.b16 %v1747, %v1747
        %v1780 = vpack.c.b16 %v1748, %v1748
        %v1781 = vpack.c.b16 %v1749, %v1749
        %v1782 = vpack.c.b16 %v1750, %v1750
        %v1783 = vpack.c.b16 %v1751, %v1751
        %v1784 = vpack.c.b16 %v1752, %v1752
        %v1785 = vpack.c.b16 %v1753, %v1753
        %v1786 = vpack.c.b16 %v1754, %v1754
        %v1787 = vpack.c.b16 %v1755, %v1755
        %v1788 = vpack.c.b16 %v1756, %v1756
        %v1789 = vpack.c.b16 %v1757, %v1757
        %v1790 = vpack.c.b16 %v1758, %v1758
        %v1791 = vpack.c.b16 %v1759, %v1759
        %v1792 = vpack.c.b16 %v1760, %v1760
        %v1793 = vpack.c.b16 %v1761, %v1761
        %v1794 = vpack.c.b16 %v1762, %v1762
        %v1795 = vpack.c.b16 %v1763, %v1763
        %v1796 = vpack.c.b16 %v1764, %v1764
        %v1797 = vpack.c.b16 %v1765, %v1765
        %v1798 = vpack.c.b16 %v1766, %v1766
        %v1799 = vpack.c.b16 %v1767, %v1767
        %v1800 = vpack.c.b16 %v1768, %v1768
        %v1801 = vpack.c.b16 %v1769, %v1769
        %v1802 = vpack.c.b16 %v1770, %v1770
        %v1803 = vpack.c.b16 %v1771, %v1771
        %1836 = vst [vmem:[%s341] sm:$0xf] %v1772
        %1837 = vst [vmem:[%s341 + $0x4] sm:$0xf] %v1773
        %1838 = vst [vmem:[%s341 + $0x8] sm:$0xf] %v1774
        %1839 = vst [vmem:[%s341 + $0xc] sm:$0xf] %v1775
        %1840 = vst [vmem:[%s341 + $0x10] sm:$0xf] %v1776
        %1841 = vst [vmem:[%s341 + $0x14] sm:$0xf] %v1777
        %1842 = vst [vmem:[%s341 + $0x18] sm:$0xf] %v1778
        %1843 = vst [vmem:[%s341 + $0x1c] sm:$0xf] %v1779
        %1844 = vst [vmem:[%s341 + $0x20] sm:$0xf] %v1780
        %1845 = vst [vmem:[%s341 + $0x24] sm:$0xf] %v1781
        %1846 = vst [vmem:[%s341 + $0x28] sm:$0xf] %v1782
        %1847 = vst [vmem:[%s341 + $0x2c] sm:$0xf] %v1783
        %1848 = vst [vmem:[%s341 + $0x30] sm:$0xf] %v1784
        %1849 = vst [vmem:[%s341 + $0x34] sm:$0xf] %v1785
        %1850 = vst [vmem:[%s341 + $0x38] sm:$0xf] %v1786
        %1851 = vst [vmem:[%s341 + $0x3c] sm:$0xf] %v1787
        %1852 = vst [vmem:[%s341 + $0x40] sm:$0xf] %v1788
        %1853 = vst [vmem:[%s341 + $0x44] sm:$0xf] %v1789
        %1854 = vst [vmem:[%s341 + $0x48] sm:$0xf] %v1790
        %1855 = vst [vmem:[%s341 + $0x4c] sm:$0xf] %v1791
        %1856 = vst [vmem:[%s341 + $0x50] sm:$0xf] %v1792
        %1857 = vst [vmem:[%s341 + $0x54] sm:$0xf] %v1793
        %1858 = vst [vmem:[%s341 + $0x58] sm:$0xf] %v1794
        %1859 = vst [vmem:[%s341 + $0x5c] sm:$0xf] %v1795
        %1860 = vst [vmem:[%s341 + $0x60] sm:$0xf] %v1796
        %1861 = vst [vmem:[%s341 + $0x64] sm:$0xf] %v1797
        %1862 = vst [vmem:[%s341 + $0x68] sm:$0xf] %v1798
        %1863 = vst [vmem:[%s341 + $0x6c] sm:$0xf] %v1799
        %1864 = vst [vmem:[%s341 + $0x70] sm:$0xf] %v1800
        %1865 = vst [vmem:[%s341 + $0x74] sm:$0xf] %v1801
        %1866 = vst [vmem:[%s341 + $0x78] sm:$0xf] %v1802
        %1867 = vst [vmem:[%s341 + $0x7c] sm:$0xf] %v1803
        %s1868 = sand.u32 %s188, 1
        %s1869 = scalar_lea.sflag [#allocation3], %s1868
        %s1870 = sand.u32 %s188, 1
        %s1871 = smul.addr %s1870, 128
        %s1872 = scalar_lea.vmem [#allocation2], %s1871
        // Predicated region
        $region41: #{tpu_custom_call.1} parent=39 // pred_check
          %p1873 = pneg %p198
        $region42: #{tpu_custom_call.1} parent=39 // pred_check_branch
          %1875 = sbr.rel (%p1873) target = $region44
        $region43: #{tpu_custom_call.1} parent=39 // pred_region
          %s1876 = smul.u32 16, %s26
          %s1878 = ssub.s32 2048, 2048
          %1879 = vsyncadd %s1869, %s1878
          %s1880 = smul.addr %s1876, 2
          %s1881 = sadd.s32 %s24, %s1880
          %s1882 = smul.addr %s25, 32
          %s1883 = sadd.s32 %s1881, %s1882
          %s1884 = smul.addr %s1883, 64
          %s1885 = scalar_lea.hbm %s5, %s1884
          %s1886 = sshll.u32 %s1872, 4
          %s1887 = int_to_ptr.vmem [resolvable:$true] %s1886
          %1892 = dma.vmem_to_hbm [thread:$0]  %s1887, 2048, %s1885, %s1869, 64, 64, 4
        $region44: #{tpu_custom_call.1} parent=39 // pred_fallthru
          _
      $region40: #{tpu_custom_call.1} parent=5 // pred_fallthru
        _
      %p1893 = scmp.le.s32.totalorder 2, %s14
      // Predicated region
      $region45: #{tpu_custom_call.1} parent=5 // pred_check
        %p1894 = pneg %p1893
      $region46: #{tpu_custom_call.1} parent=5 // pred_check_branch
        %1896 = sbr.rel (%p1894) target = $region48
      $region47: #{tpu_custom_call.1} parent=5 // pred_region
        %s1897 = ssub.s32 %s14, 2
        // Predicated region
        $region49: #{tpu_custom_call.1} parent=47 // pred_check
          %p1898 = pneg %p204
        $region50: #{tpu_custom_call.1} parent=47 // pred_check_branch
          %1900 = sbr.rel (%p1898) target = $region52
        $region51: #{tpu_custom_call.1} parent=47 // pred_region
          %s1901 = sand.u32 %s189, 1
          %s1902 = scalar_lea.sflag [#allocation3], %s1901
          %s1903 = sand.u32 %s189, 1
          %s1904 = smul.addr %s1903, 128
          %s1905 = scalar_lea.vmem [#allocation2], %s1904
          %1906 = dma.done %s1902, 2048
        $region52: #{tpu_custom_call.1} parent=47 // pred_fallthru
          _
      $region48: #{tpu_custom_call.1} parent=5 // pred_fallthru
        _
    $region6: #{tpu_custom_call.1} parent=1 // loop_footer
      %s18 = sadd.s32 1, %s14
    $region7: #{tpu_custom_call.1} parent=1 // loop_footer_branch
      %13 = sbr.rel target = $region3
    $region8: #{tpu_custom_call.1} parent=1 // loop_exit
      _
    %1907 = vsyncpa [#allocation3], 1
    %s1908 = scalar_lea.sflag [#allocation3], 1
    %1909 = vsyncpa %s1908, 1

</llo_original>
